<compile_context>
chip_gen: v6e
topology: v6e:2x2x1
jax: 0.10.0
libtpu: 0.0.40
codegen_flags: <defaults>
</compile_context>

<pallas_src>
import random as _pyrandom

import jax
import jax.numpy as jnp
from jax.experimental import pallas as pl
from jax.experimental.pallas import tpu as pltpu


def _make_remix_kernel(num_streams: int, k_per_step: int):
    """Build the kernel; num_streams / k_per_step are static closures."""
    S = num_streams
    K = k_per_step

    def kernel(perm_ref, wav_hbm, out_hbm, copy_sems):
        # perm_ref : SMEM (B*S,) int32 -- source batch index per (dst batch, stream)
        # wav_hbm  : HBM ref (B, S, C, T)   (memory_space=pl.ANY, no auto-DMA)
        # out_hbm  : HBM ref (B, S, C, T)   (written only via DMA)
        # copy_sems: DMA semaphores, shape (2, K*S) -- double-buffered by step parity
        step = pl.program_id(0)
        nsteps = pl.num_programs(0)
        cur = step % 2
        prev = 1 - cur

        # 1) Read all K*S source indices from SMEM and issue this step's
        #    HBM->HBM copies into semaphore slot `cur`. No wait has happened
        #    yet this step, so SMEM store->load forwarding is intact.
        for k in range(K):                      # static unroll
            dst_b = step * K + k
            base = dst_b * S
            for s in range(S):                  # static unroll
                src_b = perm_ref[base + s]
                pltpu.make_async_copy(
                    wav_hbm.at[src_b, s],       # (C, T) contiguous source slab
                    out_hbm.at[dst_b, s],       # (C, T) destination slab
                    copy_sems.at[cur, k * S + s],
                ).start()

        # 2) Drain the *previous* step's copies (slot `prev`). Only the
        #    semaphore and the slab shape matter for the wait, so reconstruct
        #    the descriptors with fixed indices (no SMEM reads after a wait).
        @pl.when(step > 0)
        def _():
            for k in range(K):
                for s in range(S):
                    pltpu.make_async_copy(
                        wav_hbm.at[0, 0],
                        out_hbm.at[0, 0],
                        copy_sems.at[prev, k * S + s],
                    ).wait()

        # 3) Epilogue: on the final step also drain this step's copies so the
        #    pallas_call returns only after all writes have landed.
        @pl.when(step == nsteps - 1)
        def _():
            for k in range(K):
                for s in range(S):
                    pltpu.make_async_copy(
                        wav_hbm.at[0, 0],
                        out_hbm.at[0, 0],
                        copy_sems.at[cur, k * S + s],
                    ).wait()

    return kernel


def _pick_k(batch: int) -> int:
    """Largest K in {4, 2, 1} that divides the batch (keeps the kernel simple)."""
    for k in (4, 2, 1):
        if batch % k == 0:
            return k
    return 1


def remix_gather(wav, perm_flat):
    """out[b, s, :, :] = wav[perm_flat[b*S + s], s, :, :] via direct HBM->HBM DMAs.

    wav:       (B, S, C, T) array
    perm_flat: (B*S,) int32, source batch index for each (dst batch, stream)
    """
    B, S, C, T = wav.shape
    assert perm_flat.shape == (B * S,)

    K = _pick_k(B)

    grid_spec = pltpu.PrefetchScalarGridSpec(
        num_scalar_prefetch=1,
        grid=(B // K,),
        in_specs=[pl.BlockSpec(memory_space=pl.ANY)],   # wav stays in HBM
        out_specs=pl.BlockSpec(memory_space=pl.ANY),    # output written by DMA
        scratch_shapes=[pltpu.SemaphoreType.DMA((2, K * S))],
    )

    bytes_moved = 2 * B * S * C * T * wav.dtype.itemsize  # read + write

    return pl.pallas_call(
        _make_remix_kernel(S, K),
        out_shape=jax.ShapeDtypeStruct((B, S, C, T), wav.dtype),
        grid_spec=grid_spec,
        compiler_params=pltpu.CompilerParams(
            # "arbitrary": cross-step semaphore carry is not megacore-safe.
            dimension_semantics=("arbitrary",),
        ),
        cost_estimate=pl.CostEstimate(
            flops=0, transcendentals=0, bytes_accessed=bytes_moved
        ),
    )(perm_flat, wav)


def _perm_table(key, batch, streams, group_size):
    """Flat (batch*streams,) int32 table of absolute source batch indices."""
    gsize = group_size or batch
    if batch % gsize != 0:
        raise ValueError(f"Batch size {batch} must be divisible by group size {gsize}")
    groups = batch // gsize
    # permutations = argsort(rand(groups, group_size, streams, 1, 1), dim=1)
    rand = jax.random.uniform(key, (groups, gsize, streams))
    perm = jnp.argsort(rand, axis=1)                          # (groups, gsize, streams)
    offsets = (jnp.arange(groups) * gsize)[:, None, None]     # group -> absolute index
    src_batch = (perm + offsets).astype(jnp.int32)            # (groups, gsize, streams)
    return src_batch.reshape(batch * streams)


def remix(wav, key, *, proba=1.0, group_size=4, training=True):
    """JAX equivalent of demucs Remix.forward.

    wav: (batch, streams, channels, time)
    key: jax.random key for the per-group permutations.

    Note: the apply-probability draw is a host-side Python decision, mirroring
    `random.random() < self.proba` in the original eager module. Under jax.jit
    this decision is baked in at trace time; for a per-call coin flip inside a
    jitted train step, draw a Bernoulli from `key` and select with lax.cond.
    """
    batch, streams, channels, time = wav.shape

    if not training:
        return wav

    if proba < 1.0 and not (_pyrandom.random() < proba):
        return wav

    perm_flat = _perm_table(key, batch, streams, group_size)
    return remix_gather(wav, perm_flat)


def _reference_remix(wav, perm_flat):
    """Plain-JAX reference for the permuting gather (for verification)."""
    B, S, C, T = wav.shape
    b_idx = perm_flat.reshape(B, S)                            # (B, S)
    s_idx = jnp.broadcast_to(jnp.arange(S)[None, :], (B, S))   # (B, S)
    return wav[b_idx, s_idx]                                   # (B, S, C, T)


if __name__ == "__main__":
    # Small shapes consistent with the module: (batch, streams, channels, time)
    B, S, C, T = 8, 4, 4, 128
    group_size = 4

    key = jax.random.PRNGKey(0)
    key_data, key_remix = jax.random.split(key)
    wav = jax.random.normal(key_data, (B, S, C, T), dtype=jnp.float32)

    out = remix(wav, key_remix, proba=1.0, group_size=group_size, training=True)
    out = jax.block_until_ready(out)

    # Rebuild the same permutation table and verify against a pure-JAX gather.
    perm_flat = _perm_table(key_remix, B, S, group_size)
    ref = _reference_remix(wav, perm_flat)

    assert out.shape == (B, S, C, T)
    assert out.dtype == wav.dtype
    assert jnp.array_equal(out, ref), "Pallas remix does not match reference"

    print("KERNEL_OK")
</pallas_src>

<mosaic_0001>
module attributes {stable_mosaic.version = 11 : i64} {
  func.func @kernel(%arg0: i32, %arg1: memref<32xi32, #tpu.memory_space<smem>>, %arg2: memref<8x4x4x128xf32, #tpu.memory_space<any>>, %arg3: memref<8x4x4x128xf32, #tpu.memory_space<any>>, %arg4: memref<2x16x!tpu.dma_semaphore, #tpu.memory_space<semaphore_mem>>) attributes {dimension_semantics = [#tpu.dimension_semantics<arbitrary>], iteration_bounds = array<i64: 2>, scalar_prefetch = 1 : i64, scratch_operands = 1 : i64, tpu.core_type = #tpu.core_type<tc>, window_params = [{}, {}]} {
    %c2_i32 = arith.constant 2 : i32
    %c0_i32 = arith.constant 0 : i32
    %0 = arith.cmpi eq, %c2_i32, %c0_i32 : i32
    %c1_i32 = arith.constant 1 : i32
    %1 = arith.select %0, %c1_i32, %c2_i32 : i32
    %2 = arith.remsi %arg0, %1 : i32
    %c0_i32_0 = arith.constant 0 : i32
    %3 = arith.cmpi ne, %2, %c0_i32_0 : i32
    %c0_i32_1 = arith.constant 0 : i32
    %4 = arith.cmpi slt, %2, %c0_i32_1 : i32
    %c0_i32_2 = arith.constant 0 : i32
    %5 = arith.cmpi slt, %1, %c0_i32_2 : i32
    %6 = arith.xori %4, %5 : i1
    %7 = arith.andi %6, %3 : i1
    %8 = arith.addi %2, %1 : i32
    %9 = arith.select %7, %8, %2 : i32
    %c1_i32_3 = arith.constant 1 : i32
    %10 = arith.subi %c1_i32_3, %9 : i32
    %c4_i32 = arith.constant 4 : i32
    %11 = arith.muli %arg0, %c4_i32 : i32
    %c0_i32_4 = arith.constant 0 : i32
    %12 = arith.addi %11, %c0_i32_4 : i32
    %c4_i32_5 = arith.constant 4 : i32
    %13 = arith.muli %12, %c4_i32_5 : i32
    %c0_i32_6 = arith.constant 0 : i32
    %14 = arith.addi %13, %c0_i32_6 : i32
    %15 = arith.index_cast %14 : i32 to index
    %16 = memref.load %arg1[%15] : memref<32xi32, #tpu.memory_space<smem>>
    %c0_i32_7 = arith.constant 0 : i32
    %c0_i32_8 = arith.constant 0 : i32
    %c0_i32_9 = arith.constant 0 : i32
    %c0_i32_10 = arith.constant 0 : i32
    %c0_i32_11 = arith.constant 0 : i32
    %17 = tpu.memref_slice %arg2[%16, %c0_i32_7, %c0_i32_10, %c0_i32_11] : memref<8x4x4x128xf32, #tpu.memory_space<any>> -> memref<1x1x4x128xf32, #tpu.memory_space<any>>
    %18 = tpu.memref_squeeze %17 : memref<1x1x4x128xf32, #tpu.memory_space<any>> -> memref<4x128xf32, #tpu.memory_space<any>>
    %c0_i32_12 = arith.constant 0 : i32
    %c0_i32_13 = arith.constant 0 : i32
    %19 = tpu.memref_slice %arg3[%12, %c0_i32_8, %c0_i32_12, %c0_i32_13] : memref<8x4x4x128xf32, #tpu.memory_space<any>> -> memref<1x1x4x128xf32, #tpu.memory_space<any>>
    %20 = tpu.memref_squeeze %19 : memref<1x1x4x128xf32, #tpu.memory_space<any>> -> memref<4x128xf32, #tpu.memory_space<any>>
    %21 = tpu.memref_slice %arg4[%9, %c0_i32_9] : memref<2x16x!tpu.dma_semaphore, #tpu.memory_space<semaphore_mem>> -> memref<1x1x!tpu.dma_semaphore, #tpu.memory_space<semaphore_mem>>
    %22 = tpu.memref_squeeze %21 : memref<1x1x!tpu.dma_semaphore, #tpu.memory_space<semaphore_mem>> -> memref<!tpu.dma_semaphore, #tpu.memory_space<semaphore_mem>>
    tpu.enqueue_dma source(%18 : memref<4x128xf32, #tpu.memory_space<any>>) target(%20 : memref<4x128xf32, #tpu.memory_space<any>>) target_semaphore(%22 : memref<!tpu.dma_semaphore, #tpu.memory_space<semaphore_mem>>)
    %c1_i32_14 = arith.constant 1 : i32
    %23 = arith.addi %13, %c1_i32_14 : i32
    %24 = arith.index_cast %23 : i32 to index
    %25 = memref.load %arg1[%24] : memref<32xi32, #tpu.memory_space<smem>>
    %c1_i32_15 = arith.constant 1 : i32
    %c1_i32_16 = arith.constant 1 : i32
    %c1_i32_17 = arith.constant 1 : i32
    %c0_i32_18 = arith.constant 0 : i32
    %c0_i32_19 = arith.constant 0 : i32
    %26 = tpu.memref_slice %arg2[%25, %c1_i32_15, %c0_i32_18, %c0_i32_19] : memref<8x4x4x128xf32, #tpu.memory_space<any>> -> memref<1x1x4x128xf32, #tpu.memory_space<any>>
    %27 = tpu.memref_squeeze %26 : memref<1x1x4x128xf32, #tpu.memory_space<any>> -> memref<4x128xf32, #tpu.memory_space<any>>
    %c0_i32_20 = arith.constant 0 : i32
    %c0_i32_21 = arith.constant 0 : i32
    %28 = tpu.memref_slice %arg3[%12, %c1_i32_16, %c0_i32_20, %c0_i32_21] : memref<8x4x4x128xf32, #tpu.memory_space<any>> -> memref<1x1x4x128xf32, #tpu.memory_space<any>>
    %29 = tpu.memref_squeeze %28 : memref<1x1x4x128xf32, #tpu.memory_space<any>> -> memref<4x128xf32, #tpu.memory_space<any>>
    %30 = tpu.memref_slice %arg4[%9, %c1_i32_17] : memref<2x16x!tpu.dma_semaphore, #tpu.memory_space<semaphore_mem>> -> memref<1x1x!tpu.dma_semaphore, #tpu.memory_space<semaphore_mem>>
    %31 = tpu.memref_squeeze %30 : memref<1x1x!tpu.dma_semaphore, #tpu.memory_space<semaphore_mem>> -> memref<!tpu.dma_semaphore, #tpu.memory_space<semaphore_mem>>
    tpu.enqueue_dma source(%27 : memref<4x128xf32, #tpu.memory_space<any>>) target(%29 : memref<4x128xf32, #tpu.memory_space<any>>) target_semaphore(%31 : memref<!tpu.dma_semaphore, #tpu.memory_space<semaphore_mem>>)
    %c2_i32_22 = arith.constant 2 : i32
    %32 = arith.addi %13, %c2_i32_22 : i32
    %33 = arith.index_cast %32 : i32 to index
    %34 = memref.load %arg1[%33] : memref<32xi32, #tpu.memory_space<smem>>
    %c2_i32_23 = arith.constant 2 : i32
    %c2_i32_24 = arith.constant 2 : i32
    %c2_i32_25 = arith.constant 2 : i32
    %c0_i32_26 = arith.constant 0 : i32
    %c0_i32_27 = arith.constant 0 : i32
    %35 = tpu.memref_slice %arg2[%34, %c2_i32_23, %c0_i32_26, %c0_i32_27] : memref<8x4x4x128xf32, #tpu.memory_space<any>> -> memref<1x1x4x128xf32, #tpu.memory_space<any>>
    %36 = tpu.memref_squeeze %35 : memref<1x1x4x128xf32, #tpu.memory_space<any>> -> memref<4x128xf32, #tpu.memory_space<any>>
    %c0_i32_28 = arith.constant 0 : i32
    %c0_i32_29 = arith.constant 0 : i32
    %37 = tpu.memref_slice %arg3[%12, %c2_i32_24, %c0_i32_28, %c0_i32_29] : memref<8x4x4x128xf32, #tpu.memory_space<any>> -> memref<1x1x4x128xf32, #tpu.memory_space<any>>
    %38 = tpu.memref_squeeze %37 : memref<1x1x4x128xf32, #tpu.memory_space<any>> -> memref<4x128xf32, #tpu.memory_space<any>>
    %39 = tpu.memref_slice %arg4[%9, %c2_i32_25] : memref<2x16x!tpu.dma_semaphore, #tpu.memory_space<semaphore_mem>> -> memref<1x1x!tpu.dma_semaphore, #tpu.memory_space<semaphore_mem>>
    %40 = tpu.memref_squeeze %39 : memref<1x1x!tpu.dma_semaphore, #tpu.memory_space<semaphore_mem>> -> memref<!tpu.dma_semaphore, #tpu.memory_space<semaphore_mem>>
    tpu.enqueue_dma source(%36 : memref<4x128xf32, #tpu.memory_space<any>>) target(%38 : memref<4x128xf32, #tpu.memory_space<any>>) target_semaphore(%40 : memref<!tpu.dma_semaphore, #tpu.memory_space<semaphore_mem>>)
    %c3_i32 = arith.constant 3 : i32
    %41 = arith.addi %13, %c3_i32 : i32
    %42 = arith.index_cast %41 : i32 to index
    %43 = memref.load %arg1[%42] : memref<32xi32, #tpu.memory_space<smem>>
    %c3_i32_30 = arith.constant 3 : i32
    %c3_i32_31 = arith.constant 3 : i32
    %c3_i32_32 = arith.constant 3 : i32
    %c0_i32_33 = arith.constant 0 : i32
    %c0_i32_34 = arith.constant 0 : i32
    %44 = tpu.memref_slice %arg2[%43, %c3_i32_30, %c0_i32_33, %c0_i32_34] : memref<8x4x4x128xf32, #tpu.memory_space<any>> -> memref<1x1x4x128xf32, #tpu.memory_space<any>>
    %45 = tpu.memref_squeeze %44 : memref<1x1x4x128xf32, #tpu.memory_space<any>> -> memref<4x128xf32, #tpu.memory_space<any>>
    %c0_i32_35 = arith.constant 0 : i32
    %c0_i32_36 = arith.constant 0 : i32
    %46 = tpu.memref_slice %arg3[%12, %c3_i32_31, %c0_i32_35, %c0_i32_36] : memref<8x4x4x128xf32, #tpu.memory_space<any>> -> memref<1x1x4x128xf32, #tpu.memory_space<any>>
    %47 = tpu.memref_squeeze %46 : memref<1x1x4x128xf32, #tpu.memory_space<any>> -> memref<4x128xf32, #tpu.memory_space<any>>
    %48 = tpu.memref_slice %arg4[%9, %c3_i32_32] : memref<2x16x!tpu.dma_semaphore, #tpu.memory_space<semaphore_mem>> -> memref<1x1x!tpu.dma_semaphore, #tpu.memory_space<semaphore_mem>>
    %49 = tpu.memref_squeeze %48 : memref<1x1x!tpu.dma_semaphore, #tpu.memory_space<semaphore_mem>> -> memref<!tpu.dma_semaphore, #tpu.memory_space<semaphore_mem>>
    tpu.enqueue_dma source(%45 : memref<4x128xf32, #tpu.memory_space<any>>) target(%47 : memref<4x128xf32, #tpu.memory_space<any>>) target_semaphore(%49 : memref<!tpu.dma_semaphore, #tpu.memory_space<semaphore_mem>>)
    %c4_i32_37 = arith.constant 4 : i32
    %50 = arith.muli %arg0, %c4_i32_37 : i32
    %c1_i32_38 = arith.constant 1 : i32
    %51 = arith.addi %50, %c1_i32_38 : i32
    %c4_i32_39 = arith.constant 4 : i32
    %52 = arith.muli %51, %c4_i32_39 : i32
    %c0_i32_40 = arith.constant 0 : i32
    %53 = arith.addi %52, %c0_i32_40 : i32
    %54 = arith.index_cast %53 : i32 to index
    %55 = memref.load %arg1[%54] : memref<32xi32, #tpu.memory_space<smem>>
    %c0_i32_41 = arith.constant 0 : i32
    %c0_i32_42 = arith.constant 0 : i32
    %c4_i32_43 = arith.constant 4 : i32
    %c0_i32_44 = arith.constant 0 : i32
    %c0_i32_45 = arith.constant 0 : i32
    %56 = tpu.memref_slice %arg2[%55, %c0_i32_41, %c0_i32_44, %c0_i32_45] : memref<8x4x4x128xf32, #tpu.memory_space<any>> -> memref<1x1x4x128xf32, #tpu.memory_space<any>>
    %57 = tpu.memref_squeeze %56 : memref<1x1x4x128xf32, #tpu.memory_space<any>> -> memref<4x128xf32, #tpu.memory_space<any>>
    %c0_i32_46 = arith.constant 0 : i32
    %c0_i32_47 = arith.constant 0 : i32
    %58 = tpu.memref_slice %arg3[%51, %c0_i32_42, %c0_i32_46, %c0_i32_47] : memref<8x4x4x128xf32, #tpu.memory_space<any>> -> memref<1x1x4x128xf32, #tpu.memory_space<any>>
    %59 = tpu.memref_squeeze %58 : memref<1x1x4x128xf32, #tpu.memory_space<any>> -> memref<4x128xf32, #tpu.memory_space<any>>
    %60 = tpu.memref_slice %arg4[%9, %c4_i32_43] : memref<2x16x!tpu.dma_semaphore, #tpu.memory_space<semaphore_mem>> -> memref<1x1x!tpu.dma_semaphore, #tpu.memory_space<semaphore_mem>>
    %61 = tpu.memref_squeeze %60 : memref<1x1x!tpu.dma_semaphore, #tpu.memory_space<semaphore_mem>> -> memref<!tpu.dma_semaphore, #tpu.memory_space<semaphore_mem>>
    tpu.enqueue_dma source(%57 : memref<4x128xf32, #tpu.memory_space<any>>) target(%59 : memref<4x128xf32, #tpu.memory_space<any>>) target_semaphore(%61 : memref<!tpu.dma_semaphore, #tpu.memory_space<semaphore_mem>>)
    %c1_i32_48 = arith.constant 1 : i32
    %62 = arith.addi %52, %c1_i32_48 : i32
    %63 = arith.index_cast %62 : i32 to index
    %64 = memref.load %arg1[%63] : memref<32xi32, #tpu.memory_space<smem>>
    %c1_i32_49 = arith.constant 1 : i32
    %c1_i32_50 = arith.constant 1 : i32
    %c5_i32 = arith.constant 5 : i32
    %c0_i32_51 = arith.constant 0 : i32
    %c0_i32_52 = arith.constant 0 : i32
    %65 = tpu.memref_slice %arg2[%64, %c1_i32_49, %c0_i32_51, %c0_i32_52] : memref<8x4x4x128xf32, #tpu.memory_space<any>> -> memref<1x1x4x128xf32, #tpu.memory_space<any>>
    %66 = tpu.memref_squeeze %65 : memref<1x1x4x128xf32, #tpu.memory_space<any>> -> memref<4x128xf32, #tpu.memory_space<any>>
    %c0_i32_53 = arith.constant 0 : i32
    %c0_i32_54 = arith.constant 0 : i32
    %67 = tpu.memref_slice %arg3[%51, %c1_i32_50, %c0_i32_53, %c0_i32_54] : memref<8x4x4x128xf32, #tpu.memory_space<any>> -> memref<1x1x4x128xf32, #tpu.memory_space<any>>
    %68 = tpu.memref_squeeze %67 : memref<1x1x4x128xf32, #tpu.memory_space<any>> -> memref<4x128xf32, #tpu.memory_space<any>>
    %69 = tpu.memref_slice %arg4[%9, %c5_i32] : memref<2x16x!tpu.dma_semaphore, #tpu.memory_space<semaphore_mem>> -> memref<1x1x!tpu.dma_semaphore, #tpu.memory_space<semaphore_mem>>
    %70 = tpu.memref_squeeze %69 : memref<1x1x!tpu.dma_semaphore, #tpu.memory_space<semaphore_mem>> -> memref<!tpu.dma_semaphore, #tpu.memory_space<semaphore_mem>>
    tpu.enqueue_dma source(%66 : memref<4x128xf32, #tpu.memory_space<any>>) target(%68 : memref<4x128xf32, #tpu.memory_space<any>>) target_semaphore(%70 : memref<!tpu.dma_semaphore, #tpu.memory_space<semaphore_mem>>)
    %c2_i32_55 = arith.constant 2 : i32
    %71 = arith.addi %52, %c2_i32_55 : i32
    %72 = arith.index_cast %71 : i32 to index
    %73 = memref.load %arg1[%72] : memref<32xi32, #tpu.memory_space<smem>>
    %c2_i32_56 = arith.constant 2 : i32
    %c2_i32_57 = arith.constant 2 : i32
    %c6_i32 = arith.constant 6 : i32
    %c0_i32_58 = arith.constant 0 : i32
    %c0_i32_59 = arith.constant 0 : i32
    %74 = tpu.memref_slice %arg2[%73, %c2_i32_56, %c0_i32_58, %c0_i32_59] : memref<8x4x4x128xf32, #tpu.memory_space<any>> -> memref<1x1x4x128xf32, #tpu.memory_space<any>>
    %75 = tpu.memref_squeeze %74 : memref<1x1x4x128xf32, #tpu.memory_space<any>> -> memref<4x128xf32, #tpu.memory_space<any>>
    %c0_i32_60 = arith.constant 0 : i32
    %c0_i32_61 = arith.constant 0 : i32
    %76 = tpu.memref_slice %arg3[%51, %c2_i32_57, %c0_i32_60, %c0_i32_61] : memref<8x4x4x128xf32, #tpu.memory_space<any>> -> memref<1x1x4x128xf32, #tpu.memory_space<any>>
    %77 = tpu.memref_squeeze %76 : memref<1x1x4x128xf32, #tpu.memory_space<any>> -> memref<4x128xf32, #tpu.memory_space<any>>
    %78 = tpu.memref_slice %arg4[%9, %c6_i32] : memref<2x16x!tpu.dma_semaphore, #tpu.memory_space<semaphore_mem>> -> memref<1x1x!tpu.dma_semaphore, #tpu.memory_space<semaphore_mem>>
    %79 = tpu.memref_squeeze %78 : memref<1x1x!tpu.dma_semaphore, #tpu.memory_space<semaphore_mem>> -> memref<!tpu.dma_semaphore, #tpu.memory_space<semaphore_mem>>
    tpu.enqueue_dma source(%75 : memref<4x128xf32, #tpu.memory_space<any>>) target(%77 : memref<4x128xf32, #tpu.memory_space<any>>) target_semaphore(%79 : memref<!tpu.dma_semaphore, #tpu.memory_space<semaphore_mem>>)
    %c3_i32_62 = arith.constant 3 : i32
    %80 = arith.addi %52, %c3_i32_62 : i32
    %81 = arith.index_cast %80 : i32 to index
    %82 = memref.load %arg1[%81] : memref<32xi32, #tpu.memory_space<smem>>
    %c3_i32_63 = arith.constant 3 : i32
    %c3_i32_64 = arith.constant 3 : i32
    %c7_i32 = arith.constant 7 : i32
    %c0_i32_65 = arith.constant 0 : i32
    %c0_i32_66 = arith.constant 0 : i32
    %83 = tpu.memref_slice %arg2[%82, %c3_i32_63, %c0_i32_65, %c0_i32_66] : memref<8x4x4x128xf32, #tpu.memory_space<any>> -> memref<1x1x4x128xf32, #tpu.memory_space<any>>
    %84 = tpu.memref_squeeze %83 : memref<1x1x4x128xf32, #tpu.memory_space<any>> -> memref<4x128xf32, #tpu.memory_space<any>>
    %c0_i32_67 = arith.constant 0 : i32
    %c0_i32_68 = arith.constant 0 : i32
    %85 = tpu.memref_slice %arg3[%51, %c3_i32_64, %c0_i32_67, %c0_i32_68] : memref<8x4x4x128xf32, #tpu.memory_space<any>> -> memref<1x1x4x128xf32, #tpu.memory_space<any>>
    %86 = tpu.memref_squeeze %85 : memref<1x1x4x128xf32, #tpu.memory_space<any>> -> memref<4x128xf32, #tpu.memory_space<any>>
    %87 = tpu.memref_slice %arg4[%9, %c7_i32] : memref<2x16x!tpu.dma_semaphore, #tpu.memory_space<semaphore_mem>> -> memref<1x1x!tpu.dma_semaphore, #tpu.memory_space<semaphore_mem>>
    %88 = tpu.memref_squeeze %87 : memref<1x1x!tpu.dma_semaphore, #tpu.memory_space<semaphore_mem>> -> memref<!tpu.dma_semaphore, #tpu.memory_space<semaphore_mem>>
    tpu.enqueue_dma source(%84 : memref<4x128xf32, #tpu.memory_space<any>>) target(%86 : memref<4x128xf32, #tpu.memory_space<any>>) target_semaphore(%88 : memref<!tpu.dma_semaphore, #tpu.memory_space<semaphore_mem>>)
    %c4_i32_69 = arith.constant 4 : i32
    %89 = arith.muli %arg0, %c4_i32_69 : i32
    %c2_i32_70 = arith.constant 2 : i32
    %90 = arith.addi %89, %c2_i32_70 : i32
    %c4_i32_71 = arith.constant 4 : i32
    %91 = arith.muli %90, %c4_i32_71 : i32
    %c0_i32_72 = arith.constant 0 : i32
    %92 = arith.addi %91, %c0_i32_72 : i32
    %93 = arith.index_cast %92 : i32 to index
    %94 = memref.load %arg1[%93] : memref<32xi32, #tpu.memory_space<smem>>
    %c0_i32_73 = arith.constant 0 : i32
    %c0_i32_74 = arith.constant 0 : i32
    %c8_i32 = arith.constant 8 : i32
    %c0_i32_75 = arith.constant 0 : i32
    %c0_i32_76 = arith.constant 0 : i32
    %95 = tpu.memref_slice %arg2[%94, %c0_i32_73, %c0_i32_75, %c0_i32_76] : memref<8x4x4x128xf32, #tpu.memory_space<any>> -> memref<1x1x4x128xf32, #tpu.memory_space<any>>
    %96 = tpu.memref_squeeze %95 : memref<1x1x4x128xf32, #tpu.memory_space<any>> -> memref<4x128xf32, #tpu.memory_space<any>>
    %c0_i32_77 = arith.constant 0 : i32
    %c0_i32_78 = arith.constant 0 : i32
    %97 = tpu.memref_slice %arg3[%90, %c0_i32_74, %c0_i32_77, %c0_i32_78] : memref<8x4x4x128xf32, #tpu.memory_space<any>> -> memref<1x1x4x128xf32, #tpu.memory_space<any>>
    %98 = tpu.memref_squeeze %97 : memref<1x1x4x128xf32, #tpu.memory_space<any>> -> memref<4x128xf32, #tpu.memory_space<any>>
    %99 = tpu.memref_slice %arg4[%9, %c8_i32] : memref<2x16x!tpu.dma_semaphore, #tpu.memory_space<semaphore_mem>> -> memref<1x1x!tpu.dma_semaphore, #tpu.memory_space<semaphore_mem>>
    %100 = tpu.memref_squeeze %99 : memref<1x1x!tpu.dma_semaphore, #tpu.memory_space<semaphore_mem>> -> memref<!tpu.dma_semaphore, #tpu.memory_space<semaphore_mem>>
    tpu.enqueue_dma source(%96 : memref<4x128xf32, #tpu.memory_space<any>>) target(%98 : memref<4x128xf32, #tpu.memory_space<any>>) target_semaphore(%100 : memref<!tpu.dma_semaphore, #tpu.memory_space<semaphore_mem>>)
    %c1_i32_79 = arith.constant 1 : i32
    %101 = arith.addi %91, %c1_i32_79 : i32
    %102 = arith.index_cast %101 : i32 to index
    %103 = memref.load %arg1[%102] : memref<32xi32, #tpu.memory_space<smem>>
    %c1_i32_80 = arith.constant 1 : i32
    %c1_i32_81 = arith.constant 1 : i32
    %c9_i32 = arith.constant 9 : i32
    %c0_i32_82 = arith.constant 0 : i32
    %c0_i32_83 = arith.constant 0 : i32
    %104 = tpu.memref_slice %arg2[%103, %c1_i32_80, %c0_i32_82, %c0_i32_83] : memref<8x4x4x128xf32, #tpu.memory_space<any>> -> memref<1x1x4x128xf32, #tpu.memory_space<any>>
    %105 = tpu.memref_squeeze %104 : memref<1x1x4x128xf32, #tpu.memory_space<any>> -> memref<4x128xf32, #tpu.memory_space<any>>
    %c0_i32_84 = arith.constant 0 : i32
    %c0_i32_85 = arith.constant 0 : i32
    %106 = tpu.memref_slice %arg3[%90, %c1_i32_81, %c0_i32_84, %c0_i32_85] : memref<8x4x4x128xf32, #tpu.memory_space<any>> -> memref<1x1x4x128xf32, #tpu.memory_space<any>>
    %107 = tpu.memref_squeeze %106 : memref<1x1x4x128xf32, #tpu.memory_space<any>> -> memref<4x128xf32, #tpu.memory_space<any>>
    %108 = tpu.memref_slice %arg4[%9, %c9_i32] : memref<2x16x!tpu.dma_semaphore, #tpu.memory_space<semaphore_mem>> -> memref<1x1x!tpu.dma_semaphore, #tpu.memory_space<semaphore_mem>>
    %109 = tpu.memref_squeeze %108 : memref<1x1x!tpu.dma_semaphore, #tpu.memory_space<semaphore_mem>> -> memref<!tpu.dma_semaphore, #tpu.memory_space<semaphore_mem>>
    tpu.enqueue_dma source(%105 : memref<4x128xf32, #tpu.memory_space<any>>) target(%107 : memref<4x128xf32, #tpu.memory_space<any>>) target_semaphore(%109 : memref<!tpu.dma_semaphore, #tpu.memory_space<semaphore_mem>>)
    %c2_i32_86 = arith.constant 2 : i32
    %110 = arith.addi %91, %c2_i32_86 : i32
    %111 = arith.index_cast %110 : i32 to index
    %112 = memref.load %arg1[%111] : memref<32xi32, #tpu.memory_space<smem>>
    %c2_i32_87 = arith.constant 2 : i32
    %c2_i32_88 = arith.constant 2 : i32
    %c10_i32 = arith.constant 10 : i32
    %c0_i32_89 = arith.constant 0 : i32
    %c0_i32_90 = arith.constant 0 : i32
    %113 = tpu.memref_slice %arg2[%112, %c2_i32_87, %c0_i32_89, %c0_i32_90] : memref<8x4x4x128xf32, #tpu.memory_space<any>> -> memref<1x1x4x128xf32, #tpu.memory_space<any>>
    %114 = tpu.memref_squeeze %113 : memref<1x1x4x128xf32, #tpu.memory_space<any>> -> memref<4x128xf32, #tpu.memory_space<any>>
    %c0_i32_91 = arith.constant 0 : i32
    %c0_i32_92 = arith.constant 0 : i32
    %115 = tpu.memref_slice %arg3[%90, %c2_i32_88, %c0_i32_91, %c0_i32_92] : memref<8x4x4x128xf32, #tpu.memory_space<any>> -> memref<1x1x4x128xf32, #tpu.memory_space<any>>
    %116 = tpu.memref_squeeze %115 : memref<1x1x4x128xf32, #tpu.memory_space<any>> -> memref<4x128xf32, #tpu.memory_space<any>>
    %117 = tpu.memref_slice %arg4[%9, %c10_i32] : memref<2x16x!tpu.dma_semaphore, #tpu.memory_space<semaphore_mem>> -> memref<1x1x!tpu.dma_semaphore, #tpu.memory_space<semaphore_mem>>
    %118 = tpu.memref_squeeze %117 : memref<1x1x!tpu.dma_semaphore, #tpu.memory_space<semaphore_mem>> -> memref<!tpu.dma_semaphore, #tpu.memory_space<semaphore_mem>>
    tpu.enqueue_dma source(%114 : memref<4x128xf32, #tpu.memory_space<any>>) target(%116 : memref<4x128xf32, #tpu.memory_space<any>>) target_semaphore(%118 : memref<!tpu.dma_semaphore, #tpu.memory_space<semaphore_mem>>)
    %c3_i32_93 = arith.constant 3 : i32
    %119 = arith.addi %91, %c3_i32_93 : i32
    %120 = arith.index_cast %119 : i32 to index
    %121 = memref.load %arg1[%120] : memref<32xi32, #tpu.memory_space<smem>>
    %c3_i32_94 = arith.constant 3 : i32
    %c3_i32_95 = arith.constant 3 : i32
    %c11_i32 = arith.constant 11 : i32
    %c0_i32_96 = arith.constant 0 : i32
    %c0_i32_97 = arith.constant 0 : i32
    %122 = tpu.memref_slice %arg2[%121, %c3_i32_94, %c0_i32_96, %c0_i32_97] : memref<8x4x4x128xf32, #tpu.memory_space<any>> -> memref<1x1x4x128xf32, #tpu.memory_space<any>>
    %123 = tpu.memref_squeeze %122 : memref<1x1x4x128xf32, #tpu.memory_space<any>> -> memref<4x128xf32, #tpu.memory_space<any>>
    %c0_i32_98 = arith.constant 0 : i32
    %c0_i32_99 = arith.constant 0 : i32
    %124 = tpu.memref_slice %arg3[%90, %c3_i32_95, %c0_i32_98, %c0_i32_99] : memref<8x4x4x128xf32, #tpu.memory_space<any>> -> memref<1x1x4x128xf32, #tpu.memory_space<any>>
    %125 = tpu.memref_squeeze %124 : memref<1x1x4x128xf32, #tpu.memory_space<any>> -> memref<4x128xf32, #tpu.memory_space<any>>
    %126 = tpu.memref_slice %arg4[%9, %c11_i32] : memref<2x16x!tpu.dma_semaphore, #tpu.memory_space<semaphore_mem>> -> memref<1x1x!tpu.dma_semaphore, #tpu.memory_space<semaphore_mem>>
    %127 = tpu.memref_squeeze %126 : memref<1x1x!tpu.dma_semaphore, #tpu.memory_space<semaphore_mem>> -> memref<!tpu.dma_semaphore, #tpu.memory_space<semaphore_mem>>
    tpu.enqueue_dma source(%123 : memref<4x128xf32, #tpu.memory_space<any>>) target(%125 : memref<4x128xf32, #tpu.memory_space<any>>) target_semaphore(%127 : memref<!tpu.dma_semaphore, #tpu.memory_space<semaphore_mem>>)
    %c4_i32_100 = arith.constant 4 : i32
    %128 = arith.muli %arg0, %c4_i32_100 : i32
    %c3_i32_101 = arith.constant 3 : i32
    %129 = arith.addi %128, %c3_i32_101 : i32
    %c4_i32_102 = arith.constant 4 : i32
    %130 = arith.muli %129, %c4_i32_102 : i32
    %c0_i32_103 = arith.constant 0 : i32
    %131 = arith.addi %130, %c0_i32_103 : i32
    %132 = arith.index_cast %131 : i32 to index
    %133 = memref.load %arg1[%132] : memref<32xi32, #tpu.memory_space<smem>>
    %c0_i32_104 = arith.constant 0 : i32
    %c0_i32_105 = arith.constant 0 : i32
    %c12_i32 = arith.constant 12 : i32
    %c0_i32_106 = arith.constant 0 : i32
    %c0_i32_107 = arith.constant 0 : i32
    %134 = tpu.memref_slice %arg2[%133, %c0_i32_104, %c0_i32_106, %c0_i32_107] : memref<8x4x4x128xf32, #tpu.memory_space<any>> -> memref<1x1x4x128xf32, #tpu.memory_space<any>>
    %135 = tpu.memref_squeeze %134 : memref<1x1x4x128xf32, #tpu.memory_space<any>> -> memref<4x128xf32, #tpu.memory_space<any>>
    %c0_i32_108 = arith.constant 0 : i32
    %c0_i32_109 = arith.constant 0 : i32
    %136 = tpu.memref_slice %arg3[%129, %c0_i32_105, %c0_i32_108, %c0_i32_109] : memref<8x4x4x128xf32, #tpu.memory_space<any>> -> memref<1x1x4x128xf32, #tpu.memory_space<any>>
    %137 = tpu.memref_squeeze %136 : memref<1x1x4x128xf32, #tpu.memory_space<any>> -> memref<4x128xf32, #tpu.memory_space<any>>
    %138 = tpu.memref_slice %arg4[%9, %c12_i32] : memref<2x16x!tpu.dma_semaphore, #tpu.memory_space<semaphore_mem>> -> memref<1x1x!tpu.dma_semaphore, #tpu.memory_space<semaphore_mem>>
    %139 = tpu.memref_squeeze %138 : memref<1x1x!tpu.dma_semaphore, #tpu.memory_space<semaphore_mem>> -> memref<!tpu.dma_semaphore, #tpu.memory_space<semaphore_mem>>
    tpu.enqueue_dma source(%135 : memref<4x128xf32, #tpu.memory_space<any>>) target(%137 : memref<4x128xf32, #tpu.memory_space<any>>) target_semaphore(%139 : memref<!tpu.dma_semaphore, #tpu.memory_space<semaphore_mem>>)
    %c1_i32_110 = arith.constant 1 : i32
    %140 = arith.addi %130, %c1_i32_110 : i32
    %141 = arith.index_cast %140 : i32 to index
    %142 = memref.load %arg1[%141] : memref<32xi32, #tpu.memory_space<smem>>
    %c1_i32_111 = arith.constant 1 : i32
    %c1_i32_112 = arith.constant 1 : i32
    %c13_i32 = arith.constant 13 : i32
    %c0_i32_113 = arith.constant 0 : i32
    %c0_i32_114 = arith.constant 0 : i32
    %143 = tpu.memref_slice %arg2[%142, %c1_i32_111, %c0_i32_113, %c0_i32_114] : memref<8x4x4x128xf32, #tpu.memory_space<any>> -> memref<1x1x4x128xf32, #tpu.memory_space<any>>
    %144 = tpu.memref_squeeze %143 : memref<1x1x4x128xf32, #tpu.memory_space<any>> -> memref<4x128xf32, #tpu.memory_space<any>>
    %c0_i32_115 = arith.constant 0 : i32
    %c0_i32_116 = arith.constant 0 : i32
    %145 = tpu.memref_slice %arg3[%129, %c1_i32_112, %c0_i32_115, %c0_i32_116] : memref<8x4x4x128xf32, #tpu.memory_space<any>> -> memref<1x1x4x128xf32, #tpu.memory_space<any>>
    %146 = tpu.memref_squeeze %145 : memref<1x1x4x128xf32, #tpu.memory_space<any>> -> memref<4x128xf32, #tpu.memory_space<any>>
    %147 = tpu.memref_slice %arg4[%9, %c13_i32] : memref<2x16x!tpu.dma_semaphore, #tpu.memory_space<semaphore_mem>> -> memref<1x1x!tpu.dma_semaphore, #tpu.memory_space<semaphore_mem>>
    %148 = tpu.memref_squeeze %147 : memref<1x1x!tpu.dma_semaphore, #tpu.memory_space<semaphore_mem>> -> memref<!tpu.dma_semaphore, #tpu.memory_space<semaphore_mem>>
    tpu.enqueue_dma source(%144 : memref<4x128xf32, #tpu.memory_space<any>>) target(%146 : memref<4x128xf32, #tpu.memory_space<any>>) target_semaphore(%148 : memref<!tpu.dma_semaphore, #tpu.memory_space<semaphore_mem>>)
    %c2_i32_117 = arith.constant 2 : i32
    %149 = arith.addi %130, %c2_i32_117 : i32
    %150 = arith.index_cast %149 : i32 to index
    %151 = memref.load %arg1[%150] : memref<32xi32, #tpu.memory_space<smem>>
    %c2_i32_118 = arith.constant 2 : i32
    %c2_i32_119 = arith.constant 2 : i32
    %c14_i32 = arith.constant 14 : i32
    %c0_i32_120 = arith.constant 0 : i32
    %c0_i32_121 = arith.constant 0 : i32
    %152 = tpu.memref_slice %arg2[%151, %c2_i32_118, %c0_i32_120, %c0_i32_121] : memref<8x4x4x128xf32, #tpu.memory_space<any>> -> memref<1x1x4x128xf32, #tpu.memory_space<any>>
    %153 = tpu.memref_squeeze %152 : memref<1x1x4x128xf32, #tpu.memory_space<any>> -> memref<4x128xf32, #tpu.memory_space<any>>
    %c0_i32_122 = arith.constant 0 : i32
    %c0_i32_123 = arith.constant 0 : i32
    %154 = tpu.memref_slice %arg3[%129, %c2_i32_119, %c0_i32_122, %c0_i32_123] : memref<8x4x4x128xf32, #tpu.memory_space<any>> -> memref<1x1x4x128xf32, #tpu.memory_space<any>>
    %155 = tpu.memref_squeeze %154 : memref<1x1x4x128xf32, #tpu.memory_space<any>> -> memref<4x128xf32, #tpu.memory_space<any>>
    %156 = tpu.memref_slice %arg4[%9, %c14_i32] : memref<2x16x!tpu.dma_semaphore, #tpu.memory_space<semaphore_mem>> -> memref<1x1x!tpu.dma_semaphore, #tpu.memory_space<semaphore_mem>>
    %157 = tpu.memref_squeeze %156 : memref<1x1x!tpu.dma_semaphore, #tpu.memory_space<semaphore_mem>> -> memref<!tpu.dma_semaphore, #tpu.memory_space<semaphore_mem>>
    tpu.enqueue_dma source(%153 : memref<4x128xf32, #tpu.memory_space<any>>) target(%155 : memref<4x128xf32, #tpu.memory_space<any>>) target_semaphore(%157 : memref<!tpu.dma_semaphore, #tpu.memory_space<semaphore_mem>>)
    %c3_i32_124 = arith.constant 3 : i32
    %158 = arith.addi %130, %c3_i32_124 : i32
    %159 = arith.index_cast %158 : i32 to index
    %160 = memref.load %arg1[%159] : memref<32xi32, #tpu.memory_space<smem>>
    %c3_i32_125 = arith.constant 3 : i32
    %c3_i32_126 = arith.constant 3 : i32
    %c15_i32 = arith.constant 15 : i32
    %c0_i32_127 = arith.constant 0 : i32
    %c0_i32_128 = arith.constant 0 : i32
    %161 = tpu.memref_slice %arg2[%160, %c3_i32_125, %c0_i32_127, %c0_i32_128] : memref<8x4x4x128xf32, #tpu.memory_space<any>> -> memref<1x1x4x128xf32, #tpu.memory_space<any>>
    %162 = tpu.memref_squeeze %161 : memref<1x1x4x128xf32, #tpu.memory_space<any>> -> memref<4x128xf32, #tpu.memory_space<any>>
    %c0_i32_129 = arith.constant 0 : i32
    %c0_i32_130 = arith.constant 0 : i32
    %163 = tpu.memref_slice %arg3[%129, %c3_i32_126, %c0_i32_129, %c0_i32_130] : memref<8x4x4x128xf32, #tpu.memory_space<any>> -> memref<1x1x4x128xf32, #tpu.memory_space<any>>
    %164 = tpu.memref_squeeze %163 : memref<1x1x4x128xf32, #tpu.memory_space<any>> -> memref<4x128xf32, #tpu.memory_space<any>>
    %165 = tpu.memref_slice %arg4[%9, %c15_i32] : memref<2x16x!tpu.dma_semaphore, #tpu.memory_space<semaphore_mem>> -> memref<1x1x!tpu.dma_semaphore, #tpu.memory_space<semaphore_mem>>
    %166 = tpu.memref_squeeze %165 : memref<1x1x!tpu.dma_semaphore, #tpu.memory_space<semaphore_mem>> -> memref<!tpu.dma_semaphore, #tpu.memory_space<semaphore_mem>>
    tpu.enqueue_dma source(%162 : memref<4x128xf32, #tpu.memory_space<any>>) target(%164 : memref<4x128xf32, #tpu.memory_space<any>>) target_semaphore(%166 : memref<!tpu.dma_semaphore, #tpu.memory_space<semaphore_mem>>)
    %c0_i32_131 = arith.constant 0 : i32
    %167 = arith.cmpi sgt, %arg0, %c0_i32_131 : i32
    %168 = arith.extui %167 : i1 to i32
    %c0_i32_132 = arith.constant 0 : i32
    %169 = arith.cmpi ne, %168, %c0_i32_132 : i32
    scf.if %169 {
      %c0_i32_135 = arith.constant 0 : i32
      %c0_i32_136 = arith.constant 0 : i32
      %c0_i32_137 = arith.constant 0 : i32
      %c0_i32_138 = arith.constant 0 : i32
      %c0_i32_139 = arith.constant 0 : i32
      %c0_i32_140 = arith.constant 0 : i32
      %c0_i32_141 = arith.constant 0 : i32
      %173 = tpu.memref_slice %arg2[%c0_i32_135, %c0_i32_136, %c0_i32_140, %c0_i32_141] : memref<8x4x4x128xf32, #tpu.memory_space<any>> -> memref<1x1x4x128xf32, #tpu.memory_space<any>>
      %174 = tpu.memref_squeeze %173 : memref<1x1x4x128xf32, #tpu.memory_space<any>> -> memref<4x128xf32, #tpu.memory_space<any>>
      %c0_i32_142 = arith.constant 0 : i32
      %c0_i32_143 = arith.constant 0 : i32
      %175 = tpu.memref_slice %arg3[%c0_i32_137, %c0_i32_138, %c0_i32_142, %c0_i32_143] : memref<8x4x4x128xf32, #tpu.memory_space<any>> -> memref<1x1x4x128xf32, #tpu.memory_space<any>>
      %176 = tpu.memref_squeeze %175 : memref<1x1x4x128xf32, #tpu.memory_space<any>> -> memref<4x128xf32, #tpu.memory_space<any>>
      %177 = tpu.memref_slice %arg4[%10, %c0_i32_139] : memref<2x16x!tpu.dma_semaphore, #tpu.memory_space<semaphore_mem>> -> memref<1x1x!tpu.dma_semaphore, #tpu.memory_space<semaphore_mem>>
      %178 = tpu.memref_squeeze %177 : memref<1x1x!tpu.dma_semaphore, #tpu.memory_space<semaphore_mem>> -> memref<!tpu.dma_semaphore, #tpu.memory_space<semaphore_mem>>
      tpu.wait_dma2 semaphore(%178 : memref<!tpu.dma_semaphore, #tpu.memory_space<semaphore_mem>>) src(%174 : memref<4x128xf32, #tpu.memory_space<any>>) dst(%176 : memref<4x128xf32, #tpu.memory_space<any>>)
      %c0_i32_144 = arith.constant 0 : i32
      %c0_i32_145 = arith.constant 0 : i32
      %c0_i32_146 = arith.constant 0 : i32
      %c0_i32_147 = arith.constant 0 : i32
      %c1_i32_148 = arith.constant 1 : i32
      %c0_i32_149 = arith.constant 0 : i32
      %c0_i32_150 = arith.constant 0 : i32
      %179 = tpu.memref_slice %arg2[%c0_i32_144, %c0_i32_145, %c0_i32_149, %c0_i32_150] : memref<8x4x4x128xf32, #tpu.memory_space<any>> -> memref<1x1x4x128xf32, #tpu.memory_space<any>>
      %180 = tpu.memref_squeeze %179 : memref<1x1x4x128xf32, #tpu.memory_space<any>> -> memref<4x128xf32, #tpu.memory_space<any>>
      %c0_i32_151 = arith.constant 0 : i32
      %c0_i32_152 = arith.constant 0 : i32
      %181 = tpu.memref_slice %arg3[%c0_i32_146, %c0_i32_147, %c0_i32_151, %c0_i32_152] : memref<8x4x4x128xf32, #tpu.memory_space<any>> -> memref<1x1x4x128xf32, #tpu.memory_space<any>>
      %182 = tpu.memref_squeeze %181 : memref<1x1x4x128xf32, #tpu.memory_space<any>> -> memref<4x128xf32, #tpu.memory_space<any>>
      %183 = tpu.memref_slice %arg4[%10, %c1_i32_148] : memref<2x16x!tpu.dma_semaphore, #tpu.memory_space<semaphore_mem>> -> memref<1x1x!tpu.dma_semaphore, #tpu.memory_space<semaphore_mem>>
      %184 = tpu.memref_squeeze %183 : memref<1x1x!tpu.dma_semaphore, #tpu.memory_space<semaphore_mem>> -> memref<!tpu.dma_semaphore, #tpu.memory_space<semaphore_mem>>
      tpu.wait_dma2 semaphore(%184 : memref<!tpu.dma_semaphore, #tpu.memory_space<semaphore_mem>>) src(%180 : memref<4x128xf32, #tpu.memory_space<any>>) dst(%182 : memref<4x128xf32, #tpu.memory_space<any>>)
      %c0_i32_153 = arith.constant 0 : i32
      %c0_i32_154 = arith.constant 0 : i32
      %c0_i32_155 = arith.constant 0 : i32
      %c0_i32_156 = arith.constant 0 : i32
      %c2_i32_157 = arith.constant 2 : i32
      %c0_i32_158 = arith.constant 0 : i32
      %c0_i32_159 = arith.constant 0 : i32
      %185 = tpu.memref_slice %arg2[%c0_i32_153, %c0_i32_154, %c0_i32_158, %c0_i32_159] : memref<8x4x4x128xf32, #tpu.memory_space<any>> -> memref<1x1x4x128xf32, #tpu.memory_space<any>>
      %186 = tpu.memref_squeeze %185 : memref<1x1x4x128xf32, #tpu.memory_space<any>> -> memref<4x128xf32, #tpu.memory_space<any>>
      %c0_i32_160 = arith.constant 0 : i32
      %c0_i32_161 = arith.constant 0 : i32
      %187 = tpu.memref_slice %arg3[%c0_i32_155, %c0_i32_156, %c0_i32_160, %c0_i32_161] : memref<8x4x4x128xf32, #tpu.memory_space<any>> -> memref<1x1x4x128xf32, #tpu.memory_space<any>>
      %188 = tpu.memref_squeeze %187 : memref<1x1x4x128xf32, #tpu.memory_space<any>> -> memref<4x128xf32, #tpu.memory_space<any>>
      %189 = tpu.memref_slice %arg4[%10, %c2_i32_157] : memref<2x16x!tpu.dma_semaphore, #tpu.memory_space<semaphore_mem>> -> memref<1x1x!tpu.dma_semaphore, #tpu.memory_space<semaphore_mem>>
      %190 = tpu.memref_squeeze %189 : memref<1x1x!tpu.dma_semaphore, #tpu.memory_space<semaphore_mem>> -> memref<!tpu.dma_semaphore, #tpu.memory_space<semaphore_mem>>
      tpu.wait_dma2 semaphore(%190 : memref<!tpu.dma_semaphore, #tpu.memory_space<semaphore_mem>>) src(%186 : memref<4x128xf32, #tpu.memory_space<any>>) dst(%188 : memref<4x128xf32, #tpu.memory_space<any>>)
      %c0_i32_162 = arith.constant 0 : i32
      %c0_i32_163 = arith.constant 0 : i32
      %c0_i32_164 = arith.constant 0 : i32
      %c0_i32_165 = arith.constant 0 : i32
      %c3_i32_166 = arith.constant 3 : i32
      %c0_i32_167 = arith.constant 0 : i32
      %c0_i32_168 = arith.constant 0 : i32
      %191 = tpu.memref_slice %arg2[%c0_i32_162, %c0_i32_163, %c0_i32_167, %c0_i32_168] : memref<8x4x4x128xf32, #tpu.memory_space<any>> -> memref<1x1x4x128xf32, #tpu.memory_space<any>>
      %192 = tpu.memref_squeeze %191 : memref<1x1x4x128xf32, #tpu.memory_space<any>> -> memref<4x128xf32, #tpu.memory_space<any>>
      %c0_i32_169 = arith.constant 0 : i32
      %c0_i32_170 = arith.constant 0 : i32
      %193 = tpu.memref_slice %arg3[%c0_i32_164, %c0_i32_165, %c0_i32_169, %c0_i32_170] : memref<8x4x4x128xf32, #tpu.memory_space<any>> -> memref<1x1x4x128xf32, #tpu.memory_space<any>>
      %194 = tpu.memref_squeeze %193 : memref<1x1x4x128xf32, #tpu.memory_space<any>> -> memref<4x128xf32, #tpu.memory_space<any>>
      %195 = tpu.memref_slice %arg4[%10, %c3_i32_166] : memref<2x16x!tpu.dma_semaphore, #tpu.memory_space<semaphore_mem>> -> memref<1x1x!tpu.dma_semaphore, #tpu.memory_space<semaphore_mem>>
      %196 = tpu.memref_squeeze %195 : memref<1x1x!tpu.dma_semaphore, #tpu.memory_space<semaphore_mem>> -> memref<!tpu.dma_semaphore, #tpu.memory_space<semaphore_mem>>
      tpu.wait_dma2 semaphore(%196 : memref<!tpu.dma_semaphore, #tpu.memory_space<semaphore_mem>>) src(%192 : memref<4x128xf32, #tpu.memory_space<any>>) dst(%194 : memref<4x128xf32, #tpu.memory_space<any>>)
      %c0_i32_171 = arith.constant 0 : i32
      %c0_i32_172 = arith.constant 0 : i32
      %c0_i32_173 = arith.constant 0 : i32
      %c0_i32_174 = arith.constant 0 : i32
      %c4_i32_175 = arith.constant 4 : i32
      %c0_i32_176 = arith.constant 0 : i32
      %c0_i32_177 = arith.constant 0 : i32
      %197 = tpu.memref_slice %arg2[%c0_i32_171, %c0_i32_172, %c0_i32_176, %c0_i32_177] : memref<8x4x4x128xf32, #tpu.memory_space<any>> -> memref<1x1x4x128xf32, #tpu.memory_space<any>>
      %198 = tpu.memref_squeeze %197 : memref<1x1x4x128xf32, #tpu.memory_space<any>> -> memref<4x128xf32, #tpu.memory_space<any>>
      %c0_i32_178 = arith.constant 0 : i32
      %c0_i32_179 = arith.constant 0 : i32
      %199 = tpu.memref_slice %arg3[%c0_i32_173, %c0_i32_174, %c0_i32_178, %c0_i32_179] : memref<8x4x4x128xf32, #tpu.memory_space<any>> -> memref<1x1x4x128xf32, #tpu.memory_space<any>>
      %200 = tpu.memref_squeeze %199 : memref<1x1x4x128xf32, #tpu.memory_space<any>> -> memref<4x128xf32, #tpu.memory_space<any>>
      %201 = tpu.memref_slice %arg4[%10, %c4_i32_175] : memref<2x16x!tpu.dma_semaphore, #tpu.memory_space<semaphore_mem>> -> memref<1x1x!tpu.dma_semaphore, #tpu.memory_space<semaphore_mem>>
      %202 = tpu.memref_squeeze %201 : memref<1x1x!tpu.dma_semaphore, #tpu.memory_space<semaphore_mem>> -> memref<!tpu.dma_semaphore, #tpu.memory_space<semaphore_mem>>
      tpu.wait_dma2 semaphore(%202 : memref<!tpu.dma_semaphore, #tpu.memory_space<semaphore_mem>>) src(%198 : memref<4x128xf32, #tpu.memory_space<any>>) dst(%200 : memref<4x128xf32, #tpu.memory_space<any>>)
      %c0_i32_180 = arith.constant 0 : i32
      %c0_i32_181 = arith.constant 0 : i32
      %c0_i32_182 = arith.constant 0 : i32
      %c0_i32_183 = arith.constant 0 : i32
      %c5_i32_184 = arith.constant 5 : i32
      %c0_i32_185 = arith.constant 0 : i32
      %c0_i32_186 = arith.constant 0 : i32
      %203 = tpu.memref_slice %arg2[%c0_i32_180, %c0_i32_181, %c0_i32_185, %c0_i32_186] : memref<8x4x4x128xf32, #tpu.memory_space<any>> -> memref<1x1x4x128xf32, #tpu.memory_space<any>>
      %204 = tpu.memref_squeeze %203 : memref<1x1x4x128xf32, #tpu.memory_space<any>> -> memref<4x128xf32, #tpu.memory_space<any>>
      %c0_i32_187 = arith.constant 0 : i32
      %c0_i32_188 = arith.constant 0 : i32
      %205 = tpu.memref_slice %arg3[%c0_i32_182, %c0_i32_183, %c0_i32_187, %c0_i32_188] : memref<8x4x4x128xf32, #tpu.memory_space<any>> -> memref<1x1x4x128xf32, #tpu.memory_space<any>>
      %206 = tpu.memref_squeeze %205 : memref<1x1x4x128xf32, #tpu.memory_space<any>> -> memref<4x128xf32, #tpu.memory_space<any>>
      %207 = tpu.memref_slice %arg4[%10, %c5_i32_184] : memref<2x16x!tpu.dma_semaphore, #tpu.memory_space<semaphore_mem>> -> memref<1x1x!tpu.dma_semaphore, #tpu.memory_space<semaphore_mem>>
      %208 = tpu.memref_squeeze %207 : memref<1x1x!tpu.dma_semaphore, #tpu.memory_space<semaphore_mem>> -> memref<!tpu.dma_semaphore, #tpu.memory_space<semaphore_mem>>
      tpu.wait_dma2 semaphore(%208 : memref<!tpu.dma_semaphore, #tpu.memory_space<semaphore_mem>>) src(%204 : memref<4x128xf32, #tpu.memory_space<any>>) dst(%206 : memref<4x128xf32, #tpu.memory_space<any>>)
      %c0_i32_189 = arith.constant 0 : i32
      %c0_i32_190 = arith.constant 0 : i32
      %c0_i32_191 = arith.constant 0 : i32
      %c0_i32_192 = arith.constant 0 : i32
      %c6_i32_193 = arith.constant 6 : i32
      %c0_i32_194 = arith.constant 0 : i32
      %c0_i32_195 = arith.constant 0 : i32
      %209 = tpu.memref_slice %arg2[%c0_i32_189, %c0_i32_190, %c0_i32_194, %c0_i32_195] : memref<8x4x4x128xf32, #tpu.memory_space<any>> -> memref<1x1x4x128xf32, #tpu.memory_space<any>>
      %210 = tpu.memref_squeeze %209 : memref<1x1x4x128xf32, #tpu.memory_space<any>> -> memref<4x128xf32, #tpu.memory_space<any>>
      %c0_i32_196 = arith.constant 0 : i32
      %c0_i32_197 = arith.constant 0 : i32
      %211 = tpu.memref_slice %arg3[%c0_i32_191, %c0_i32_192, %c0_i32_196, %c0_i32_197] : memref<8x4x4x128xf32, #tpu.memory_space<any>> -> memref<1x1x4x128xf32, #tpu.memory_space<any>>
      %212 = tpu.memref_squeeze %211 : memref<1x1x4x128xf32, #tpu.memory_space<any>> -> memref<4x128xf32, #tpu.memory_space<any>>
      %213 = tpu.memref_slice %arg4[%10, %c6_i32_193] : memref<2x16x!tpu.dma_semaphore, #tpu.memory_space<semaphore_mem>> -> memref<1x1x!tpu.dma_semaphore, #tpu.memory_space<semaphore_mem>>
      %214 = tpu.memref_squeeze %213 : memref<1x1x!tpu.dma_semaphore, #tpu.memory_space<semaphore_mem>> -> memref<!tpu.dma_semaphore, #tpu.memory_space<semaphore_mem>>
      tpu.wait_dma2 semaphore(%214 : memref<!tpu.dma_semaphore, #tpu.memory_space<semaphore_mem>>) src(%210 : memref<4x128xf32, #tpu.memory_space<any>>) dst(%212 : memref<4x128xf32, #tpu.memory_space<any>>)
      %c0_i32_198 = arith.constant 0 : i32
      %c0_i32_199 = arith.constant 0 : i32
      %c0_i32_200 = arith.constant 0 : i32
      %c0_i32_201 = arith.constant 0 : i32
      %c7_i32_202 = arith.constant 7 : i32
      %c0_i32_203 = arith.constant 0 : i32
      %c0_i32_204 = arith.constant 0 : i32
      %215 = tpu.memref_slice %arg2[%c0_i32_198, %c0_i32_199, %c0_i32_203, %c0_i32_204] : memref<8x4x4x128xf32, #tpu.memory_space<any>> -> memref<1x1x4x128xf32, #tpu.memory_space<any>>
      %216 = tpu.memref_squeeze %215 : memref<1x1x4x128xf32, #tpu.memory_space<any>> -> memref<4x128xf32, #tpu.memory_space<any>>
      %c0_i32_205 = arith.constant 0 : i32
      %c0_i32_206 = arith.constant 0 : i32
      %217 = tpu.memref_slice %arg3[%c0_i32_200, %c0_i32_201, %c0_i32_205, %c0_i32_206] : memref<8x4x4x128xf32, #tpu.memory_space<any>> -> memref<1x1x4x128xf32, #tpu.memory_space<any>>
      %218 = tpu.memref_squeeze %217 : memref<1x1x4x128xf32, #tpu.memory_space<any>> -> memref<4x128xf32, #tpu.memory_space<any>>
      %219 = tpu.memref_slice %arg4[%10, %c7_i32_202] : memref<2x16x!tpu.dma_semaphore, #tpu.memory_space<semaphore_mem>> -> memref<1x1x!tpu.dma_semaphore, #tpu.memory_space<semaphore_mem>>
      %220 = tpu.memref_squeeze %219 : memref<1x1x!tpu.dma_semaphore, #tpu.memory_space<semaphore_mem>> -> memref<!tpu.dma_semaphore, #tpu.memory_space<semaphore_mem>>
      tpu.wait_dma2 semaphore(%220 : memref<!tpu.dma_semaphore, #tpu.memory_space<semaphore_mem>>) src(%216 : memref<4x128xf32, #tpu.memory_space<any>>) dst(%218 : memref<4x128xf32, #tpu.memory_space<any>>)
      %c0_i32_207 = arith.constant 0 : i32
      %c0_i32_208 = arith.constant 0 : i32
      %c0_i32_209 = arith.constant 0 : i32
      %c0_i32_210 = arith.constant 0 : i32
      %c8_i32_211 = arith.constant 8 : i32
      %c0_i32_212 = arith.constant 0 : i32
      %c0_i32_213 = arith.constant 0 : i32
      %221 = tpu.memref_slice %arg2[%c0_i32_207, %c0_i32_208, %c0_i32_212, %c0_i32_213] : memref<8x4x4x128xf32, #tpu.memory_space<any>> -> memref<1x1x4x128xf32, #tpu.memory_space<any>>
      %222 = tpu.memref_squeeze %221 : memref<1x1x4x128xf32, #tpu.memory_space<any>> -> memref<4x128xf32, #tpu.memory_space<any>>
      %c0_i32_214 = arith.constant 0 : i32
      %c0_i32_215 = arith.constant 0 : i32
      %223 = tpu.memref_slice %arg3[%c0_i32_209, %c0_i32_210, %c0_i32_214, %c0_i32_215] : memref<8x4x4x128xf32, #tpu.memory_space<any>> -> memref<1x1x4x128xf32, #tpu.memory_space<any>>
      %224 = tpu.memref_squeeze %223 : memref<1x1x4x128xf32, #tpu.memory_space<any>> -> memref<4x128xf32, #tpu.memory_space<any>>
      %225 = tpu.memref_slice %arg4[%10, %c8_i32_211] : memref<2x16x!tpu.dma_semaphore, #tpu.memory_space<semaphore_mem>> -> memref<1x1x!tpu.dma_semaphore, #tpu.memory_space<semaphore_mem>>
      %226 = tpu.memref_squeeze %225 : memref<1x1x!tpu.dma_semaphore, #tpu.memory_space<semaphore_mem>> -> memref<!tpu.dma_semaphore, #tpu.memory_space<semaphore_mem>>
      tpu.wait_dma2 semaphore(%226 : memref<!tpu.dma_semaphore, #tpu.memory_space<semaphore_mem>>) src(%222 : memref<4x128xf32, #tpu.memory_space<any>>) dst(%224 : memref<4x128xf32, #tpu.memory_space<any>>)
      %c0_i32_216 = arith.constant 0 : i32
      %c0_i32_217 = arith.constant 0 : i32
      %c0_i32_218 = arith.constant 0 : i32
      %c0_i32_219 = arith.constant 0 : i32
      %c9_i32_220 = arith.constant 9 : i32
      %c0_i32_221 = arith.constant 0 : i32
      %c0_i32_222 = arith.constant 0 : i32
      %227 = tpu.memref_slice %arg2[%c0_i32_216, %c0_i32_217, %c0_i32_221, %c0_i32_222] : memref<8x4x4x128xf32, #tpu.memory_space<any>> -> memref<1x1x4x128xf32, #tpu.memory_space<any>>
      %228 = tpu.memref_squeeze %227 : memref<1x1x4x128xf32, #tpu.memory_space<any>> -> memref<4x128xf32, #tpu.memory_space<any>>
      %c0_i32_223 = arith.constant 0 : i32
      %c0_i32_224 = arith.constant 0 : i32
      %229 = tpu.memref_slice %arg3[%c0_i32_218, %c0_i32_219, %c0_i32_223, %c0_i32_224] : memref<8x4x4x128xf32, #tpu.memory_space<any>> -> memref<1x1x4x128xf32, #tpu.memory_space<any>>
      %230 = tpu.memref_squeeze %229 : memref<1x1x4x128xf32, #tpu.memory_space<any>> -> memref<4x128xf32, #tpu.memory_space<any>>
      %231 = tpu.memref_slice %arg4[%10, %c9_i32_220] : memref<2x16x!tpu.dma_semaphore, #tpu.memory_space<semaphore_mem>> -> memref<1x1x!tpu.dma_semaphore, #tpu.memory_space<semaphore_mem>>
      %232 = tpu.memref_squeeze %231 : memref<1x1x!tpu.dma_semaphore, #tpu.memory_space<semaphore_mem>> -> memref<!tpu.dma_semaphore, #tpu.memory_space<semaphore_mem>>
      tpu.wait_dma2 semaphore(%232 : memref<!tpu.dma_semaphore, #tpu.memory_space<semaphore_mem>>) src(%228 : memref<4x128xf32, #tpu.memory_space<any>>) dst(%230 : memref<4x128xf32, #tpu.memory_space<any>>)
      %c0_i32_225 = arith.constant 0 : i32
      %c0_i32_226 = arith.constant 0 : i32
      %c0_i32_227 = arith.constant 0 : i32
      %c0_i32_228 = arith.constant 0 : i32
      %c10_i32_229 = arith.constant 10 : i32
      %c0_i32_230 = arith.constant 0 : i32
      %c0_i32_231 = arith.constant 0 : i32
      %233 = tpu.memref_slice %arg2[%c0_i32_225, %c0_i32_226, %c0_i32_230, %c0_i32_231] : memref<8x4x4x128xf32, #tpu.memory_space<any>> -> memref<1x1x4x128xf32, #tpu.memory_space<any>>
      %234 = tpu.memref_squeeze %233 : memref<1x1x4x128xf32, #tpu.memory_space<any>> -> memref<4x128xf32, #tpu.memory_space<any>>
      %c0_i32_232 = arith.constant 0 : i32
      %c0_i32_233 = arith.constant 0 : i32
      %235 = tpu.memref_slice %arg3[%c0_i32_227, %c0_i32_228, %c0_i32_232, %c0_i32_233] : memref<8x4x4x128xf32, #tpu.memory_space<any>> -> memref<1x1x4x128xf32, #tpu.memory_space<any>>
      %236 = tpu.memref_squeeze %235 : memref<1x1x4x128xf32, #tpu.memory_space<any>> -> memref<4x128xf32, #tpu.memory_space<any>>
      %237 = tpu.memref_slice %arg4[%10, %c10_i32_229] : memref<2x16x!tpu.dma_semaphore, #tpu.memory_space<semaphore_mem>> -> memref<1x1x!tpu.dma_semaphore, #tpu.memory_space<semaphore_mem>>
      %238 = tpu.memref_squeeze %237 : memref<1x1x!tpu.dma_semaphore, #tpu.memory_space<semaphore_mem>> -> memref<!tpu.dma_semaphore, #tpu.memory_space<semaphore_mem>>
      tpu.wait_dma2 semaphore(%238 : memref<!tpu.dma_semaphore, #tpu.memory_space<semaphore_mem>>) src(%234 : memref<4x128xf32, #tpu.memory_space<any>>) dst(%236 : memref<4x128xf32, #tpu.memory_space<any>>)
      %c0_i32_234 = arith.constant 0 : i32
      %c0_i32_235 = arith.constant 0 : i32
      %c0_i32_236 = arith.constant 0 : i32
      %c0_i32_237 = arith.constant 0 : i32
      %c11_i32_238 = arith.constant 11 : i32
      %c0_i32_239 = arith.constant 0 : i32
      %c0_i32_240 = arith.constant 0 : i32
      %239 = tpu.memref_slice %arg2[%c0_i32_234, %c0_i32_235, %c0_i32_239, %c0_i32_240] : memref<8x4x4x128xf32, #tpu.memory_space<any>> -> memref<1x1x4x128xf32, #tpu.memory_space<any>>
      %240 = tpu.memref_squeeze %239 : memref<1x1x4x128xf32, #tpu.memory_space<any>> -> memref<4x128xf32, #tpu.memory_space<any>>
      %c0_i32_241 = arith.constant 0 : i32
      %c0_i32_242 = arith.constant 0 : i32
      %241 = tpu.memref_slice %arg3[%c0_i32_236, %c0_i32_237, %c0_i32_241, %c0_i32_242] : memref<8x4x4x128xf32, #tpu.memory_space<any>> -> memref<1x1x4x128xf32, #tpu.memory_space<any>>
      %242 = tpu.memref_squeeze %241 : memref<1x1x4x128xf32, #tpu.memory_space<any>> -> memref<4x128xf32, #tpu.memory_space<any>>
      %243 = tpu.memref_slice %arg4[%10, %c11_i32_238] : memref<2x16x!tpu.dma_semaphore, #tpu.memory_space<semaphore_mem>> -> memref<1x1x!tpu.dma_semaphore, #tpu.memory_space<semaphore_mem>>
      %244 = tpu.memref_squeeze %243 : memref<1x1x!tpu.dma_semaphore, #tpu.memory_space<semaphore_mem>> -> memref<!tpu.dma_semaphore, #tpu.memory_space<semaphore_mem>>
      tpu.wait_dma2 semaphore(%244 : memref<!tpu.dma_semaphore, #tpu.memory_space<semaphore_mem>>) src(%240 : memref<4x128xf32, #tpu.memory_space<any>>) dst(%242 : memref<4x128xf32, #tpu.memory_space<any>>)
      %c0_i32_243 = arith.constant 0 : i32
      %c0_i32_244 = arith.constant 0 : i32
      %c0_i32_245 = arith.constant 0 : i32
      %c0_i32_246 = arith.constant 0 : i32
      %c12_i32_247 = arith.constant 12 : i32
      %c0_i32_248 = arith.constant 0 : i32
      %c0_i32_249 = arith.constant 0 : i32
      %245 = tpu.memref_slice %arg2[%c0_i32_243, %c0_i32_244, %c0_i32_248, %c0_i32_249] : memref<8x4x4x128xf32, #tpu.memory_space<any>> -> memref<1x1x4x128xf32, #tpu.memory_space<any>>
      %246 = tpu.memref_squeeze %245 : memref<1x1x4x128xf32, #tpu.memory_space<any>> -> memref<4x128xf32, #tpu.memory_space<any>>
      %c0_i32_250 = arith.constant 0 : i32
      %c0_i32_251 = arith.constant 0 : i32
      %247 = tpu.memref_slice %arg3[%c0_i32_245, %c0_i32_246, %c0_i32_250, %c0_i32_251] : memref<8x4x4x128xf32, #tpu.memory_space<any>> -> memref<1x1x4x128xf32, #tpu.memory_space<any>>
      %248 = tpu.memref_squeeze %247 : memref<1x1x4x128xf32, #tpu.memory_space<any>> -> memref<4x128xf32, #tpu.memory_space<any>>
      %249 = tpu.memref_slice %arg4[%10, %c12_i32_247] : memref<2x16x!tpu.dma_semaphore, #tpu.memory_space<semaphore_mem>> -> memref<1x1x!tpu.dma_semaphore, #tpu.memory_space<semaphore_mem>>
      %250 = tpu.memref_squeeze %249 : memref<1x1x!tpu.dma_semaphore, #tpu.memory_space<semaphore_mem>> -> memref<!tpu.dma_semaphore, #tpu.memory_space<semaphore_mem>>
      tpu.wait_dma2 semaphore(%250 : memref<!tpu.dma_semaphore, #tpu.memory_space<semaphore_mem>>) src(%246 : memref<4x128xf32, #tpu.memory_space<any>>) dst(%248 : memref<4x128xf32, #tpu.memory_space<any>>)
      %c0_i32_252 = arith.constant 0 : i32
      %c0_i32_253 = arith.constant 0 : i32
      %c0_i32_254 = arith.constant 0 : i32
      %c0_i32_255 = arith.constant 0 : i32
      %c13_i32_256 = arith.constant 13 : i32
      %c0_i32_257 = arith.constant 0 : i32
      %c0_i32_258 = arith.constant 0 : i32
      %251 = tpu.memref_slice %arg2[%c0_i32_252, %c0_i32_253, %c0_i32_257, %c0_i32_258] : memref<8x4x4x128xf32, #tpu.memory_space<any>> -> memref<1x1x4x128xf32, #tpu.memory_space<any>>
      %252 = tpu.memref_squeeze %251 : memref<1x1x4x128xf32, #tpu.memory_space<any>> -> memref<4x128xf32, #tpu.memory_space<any>>
      %c0_i32_259 = arith.constant 0 : i32
      %c0_i32_260 = arith.constant 0 : i32
      %253 = tpu.memref_slice %arg3[%c0_i32_254, %c0_i32_255, %c0_i32_259, %c0_i32_260] : memref<8x4x4x128xf32, #tpu.memory_space<any>> -> memref<1x1x4x128xf32, #tpu.memory_space<any>>
      %254 = tpu.memref_squeeze %253 : memref<1x1x4x128xf32, #tpu.memory_space<any>> -> memref<4x128xf32, #tpu.memory_space<any>>
      %255 = tpu.memref_slice %arg4[%10, %c13_i32_256] : memref<2x16x!tpu.dma_semaphore, #tpu.memory_space<semaphore_mem>> -> memref<1x1x!tpu.dma_semaphore, #tpu.memory_space<semaphore_mem>>
      %256 = tpu.memref_squeeze %255 : memref<1x1x!tpu.dma_semaphore, #tpu.memory_space<semaphore_mem>> -> memref<!tpu.dma_semaphore, #tpu.memory_space<semaphore_mem>>
      tpu.wait_dma2 semaphore(%256 : memref<!tpu.dma_semaphore, #tpu.memory_space<semaphore_mem>>) src(%252 : memref<4x128xf32, #tpu.memory_space<any>>) dst(%254 : memref<4x128xf32, #tpu.memory_space<any>>)
      %c0_i32_261 = arith.constant 0 : i32
      %c0_i32_262 = arith.constant 0 : i32
      %c0_i32_263 = arith.constant 0 : i32
      %c0_i32_264 = arith.constant 0 : i32
      %c14_i32_265 = arith.constant 14 : i32
      %c0_i32_266 = arith.constant 0 : i32
      %c0_i32_267 = arith.constant 0 : i32
      %257 = tpu.memref_slice %arg2[%c0_i32_261, %c0_i32_262, %c0_i32_266, %c0_i32_267] : memref<8x4x4x128xf32, #tpu.memory_space<any>> -> memref<1x1x4x128xf32, #tpu.memory_space<any>>
      %258 = tpu.memref_squeeze %257 : memref<1x1x4x128xf32, #tpu.memory_space<any>> -> memref<4x128xf32, #tpu.memory_space<any>>
      %c0_i32_268 = arith.constant 0 : i32
      %c0_i32_269 = arith.constant 0 : i32
      %259 = tpu.memref_slice %arg3[%c0_i32_263, %c0_i32_264, %c0_i32_268, %c0_i32_269] : memref<8x4x4x128xf32, #tpu.memory_space<any>> -> memref<1x1x4x128xf32, #tpu.memory_space<any>>
      %260 = tpu.memref_squeeze %259 : memref<1x1x4x128xf32, #tpu.memory_space<any>> -> memref<4x128xf32, #tpu.memory_space<any>>
      %261 = tpu.memref_slice %arg4[%10, %c14_i32_265] : memref<2x16x!tpu.dma_semaphore, #tpu.memory_space<semaphore_mem>> -> memref<1x1x!tpu.dma_semaphore, #tpu.memory_space<semaphore_mem>>
      %262 = tpu.memref_squeeze %261 : memref<1x1x!tpu.dma_semaphore, #tpu.memory_space<semaphore_mem>> -> memref<!tpu.dma_semaphore, #tpu.memory_space<semaphore_mem>>
      tpu.wait_dma2 semaphore(%262 : memref<!tpu.dma_semaphore, #tpu.memory_space<semaphore_mem>>) src(%258 : memref<4x128xf32, #tpu.memory_space<any>>) dst(%260 : memref<4x128xf32, #tpu.memory_space<any>>)
      %c0_i32_270 = arith.constant 0 : i32
      %c0_i32_271 = arith.constant 0 : i32
      %c0_i32_272 = arith.constant 0 : i32
      %c0_i32_273 = arith.constant 0 : i32
      %c15_i32_274 = arith.constant 15 : i32
      %c0_i32_275 = arith.constant 0 : i32
      %c0_i32_276 = arith.constant 0 : i32
      %263 = tpu.memref_slice %arg2[%c0_i32_270, %c0_i32_271, %c0_i32_275, %c0_i32_276] : memref<8x4x4x128xf32, #tpu.memory_space<any>> -> memref<1x1x4x128xf32, #tpu.memory_space<any>>
      %264 = tpu.memref_squeeze %263 : memref<1x1x4x128xf32, #tpu.memory_space<any>> -> memref<4x128xf32, #tpu.memory_space<any>>
      %c0_i32_277 = arith.constant 0 : i32
      %c0_i32_278 = arith.constant 0 : i32
      %265 = tpu.memref_slice %arg3[%c0_i32_272, %c0_i32_273, %c0_i32_277, %c0_i32_278] : memref<8x4x4x128xf32, #tpu.memory_space<any>> -> memref<1x1x4x128xf32, #tpu.memory_space<any>>
      %266 = tpu.memref_squeeze %265 : memref<1x1x4x128xf32, #tpu.memory_space<any>> -> memref<4x128xf32, #tpu.memory_space<any>>
      %267 = tpu.memref_slice %arg4[%10, %c15_i32_274] : memref<2x16x!tpu.dma_semaphore, #tpu.memory_space<semaphore_mem>> -> memref<1x1x!tpu.dma_semaphore, #tpu.memory_space<semaphore_mem>>
      %268 = tpu.memref_squeeze %267 : memref<1x1x!tpu.dma_semaphore, #tpu.memory_space<semaphore_mem>> -> memref<!tpu.dma_semaphore, #tpu.memory_space<semaphore_mem>>
      tpu.wait_dma2 semaphore(%268 : memref<!tpu.dma_semaphore, #tpu.memory_space<semaphore_mem>>) src(%264 : memref<4x128xf32, #tpu.memory_space<any>>) dst(%266 : memref<4x128xf32, #tpu.memory_space<any>>)
    } else {
    }
    %c1_i32_133 = arith.constant 1 : i32
    %170 = arith.cmpi eq, %arg0, %c1_i32_133 : i32
    %171 = arith.extui %170 : i1 to i32
    %c0_i32_134 = arith.constant 0 : i32
    %172 = arith.cmpi ne, %171, %c0_i32_134 : i32
    scf.if %172 {
      %c0_i32_135 = arith.constant 0 : i32
      %c0_i32_136 = arith.constant 0 : i32
      %c0_i32_137 = arith.constant 0 : i32
      %c0_i32_138 = arith.constant 0 : i32
      %c0_i32_139 = arith.constant 0 : i32
      %c0_i32_140 = arith.constant 0 : i32
      %c0_i32_141 = arith.constant 0 : i32
      %173 = tpu.memref_slice %arg2[%c0_i32_135, %c0_i32_136, %c0_i32_140, %c0_i32_141] : memref<8x4x4x128xf32, #tpu.memory_space<any>> -> memref<1x1x4x128xf32, #tpu.memory_space<any>>
      %174 = tpu.memref_squeeze %173 : memref<1x1x4x128xf32, #tpu.memory_space<any>> -> memref<4x128xf32, #tpu.memory_space<any>>
      %c0_i32_142 = arith.constant 0 : i32
      %c0_i32_143 = arith.constant 0 : i32
      %175 = tpu.memref_slice %arg3[%c0_i32_137, %c0_i32_138, %c0_i32_142, %c0_i32_143] : memref<8x4x4x128xf32, #tpu.memory_space<any>> -> memref<1x1x4x128xf32, #tpu.memory_space<any>>
      %176 = tpu.memref_squeeze %175 : memref<1x1x4x128xf32, #tpu.memory_space<any>> -> memref<4x128xf32, #tpu.memory_space<any>>
      %177 = tpu.memref_slice %arg4[%9, %c0_i32_139] : memref<2x16x!tpu.dma_semaphore, #tpu.memory_space<semaphore_mem>> -> memref<1x1x!tpu.dma_semaphore, #tpu.memory_space<semaphore_mem>>
      %178 = tpu.memref_squeeze %177 : memref<1x1x!tpu.dma_semaphore, #tpu.memory_space<semaphore_mem>> -> memref<!tpu.dma_semaphore, #tpu.memory_space<semaphore_mem>>
      tpu.wait_dma2 semaphore(%178 : memref<!tpu.dma_semaphore, #tpu.memory_space<semaphore_mem>>) src(%174 : memref<4x128xf32, #tpu.memory_space<any>>) dst(%176 : memref<4x128xf32, #tpu.memory_space<any>>)
      %c0_i32_144 = arith.constant 0 : i32
      %c0_i32_145 = arith.constant 0 : i32
      %c0_i32_146 = arith.constant 0 : i32
      %c0_i32_147 = arith.constant 0 : i32
      %c1_i32_148 = arith.constant 1 : i32
      %c0_i32_149 = arith.constant 0 : i32
      %c0_i32_150 = arith.constant 0 : i32
      %179 = tpu.memref_slice %arg2[%c0_i32_144, %c0_i32_145, %c0_i32_149, %c0_i32_150] : memref<8x4x4x128xf32, #tpu.memory_space<any>> -> memref<1x1x4x128xf32, #tpu.memory_space<any>>
      %180 = tpu.memref_squeeze %179 : memref<1x1x4x128xf32, #tpu.memory_space<any>> -> memref<4x128xf32, #tpu.memory_space<any>>
      %c0_i32_151 = arith.constant 0 : i32
      %c0_i32_152 = arith.constant 0 : i32
      %181 = tpu.memref_slice %arg3[%c0_i32_146, %c0_i32_147, %c0_i32_151, %c0_i32_152] : memref<8x4x4x128xf32, #tpu.memory_space<any>> -> memref<1x1x4x128xf32, #tpu.memory_space<any>>
      %182 = tpu.memref_squeeze %181 : memref<1x1x4x128xf32, #tpu.memory_space<any>> -> memref<4x128xf32, #tpu.memory_space<any>>
      %183 = tpu.memref_slice %arg4[%9, %c1_i32_148] : memref<2x16x!tpu.dma_semaphore, #tpu.memory_space<semaphore_mem>> -> memref<1x1x!tpu.dma_semaphore, #tpu.memory_space<semaphore_mem>>
      %184 = tpu.memref_squeeze %183 : memref<1x1x!tpu.dma_semaphore, #tpu.memory_space<semaphore_mem>> -> memref<!tpu.dma_semaphore, #tpu.memory_space<semaphore_mem>>
      tpu.wait_dma2 semaphore(%184 : memref<!tpu.dma_semaphore, #tpu.memory_space<semaphore_mem>>) src(%180 : memref<4x128xf32, #tpu.memory_space<any>>) dst(%182 : memref<4x128xf32, #tpu.memory_space<any>>)
      %c0_i32_153 = arith.constant 0 : i32
      %c0_i32_154 = arith.constant 0 : i32
      %c0_i32_155 = arith.constant 0 : i32
      %c0_i32_156 = arith.constant 0 : i32
      %c2_i32_157 = arith.constant 2 : i32
      %c0_i32_158 = arith.constant 0 : i32
      %c0_i32_159 = arith.constant 0 : i32
      %185 = tpu.memref_slice %arg2[%c0_i32_153, %c0_i32_154, %c0_i32_158, %c0_i32_159] : memref<8x4x4x128xf32, #tpu.memory_space<any>> -> memref<1x1x4x128xf32, #tpu.memory_space<any>>
      %186 = tpu.memref_squeeze %185 : memref<1x1x4x128xf32, #tpu.memory_space<any>> -> memref<4x128xf32, #tpu.memory_space<any>>
      %c0_i32_160 = arith.constant 0 : i32
      %c0_i32_161 = arith.constant 0 : i32
      %187 = tpu.memref_slice %arg3[%c0_i32_155, %c0_i32_156, %c0_i32_160, %c0_i32_161] : memref<8x4x4x128xf32, #tpu.memory_space<any>> -> memref<1x1x4x128xf32, #tpu.memory_space<any>>
      %188 = tpu.memref_squeeze %187 : memref<1x1x4x128xf32, #tpu.memory_space<any>> -> memref<4x128xf32, #tpu.memory_space<any>>
      %189 = tpu.memref_slice %arg4[%9, %c2_i32_157] : memref<2x16x!tpu.dma_semaphore, #tpu.memory_space<semaphore_mem>> -> memref<1x1x!tpu.dma_semaphore, #tpu.memory_space<semaphore_mem>>
      %190 = tpu.memref_squeeze %189 : memref<1x1x!tpu.dma_semaphore, #tpu.memory_space<semaphore_mem>> -> memref<!tpu.dma_semaphore, #tpu.memory_space<semaphore_mem>>
      tpu.wait_dma2 semaphore(%190 : memref<!tpu.dma_semaphore, #tpu.memory_space<semaphore_mem>>) src(%186 : memref<4x128xf32, #tpu.memory_space<any>>) dst(%188 : memref<4x128xf32, #tpu.memory_space<any>>)
      %c0_i32_162 = arith.constant 0 : i32
      %c0_i32_163 = arith.constant 0 : i32
      %c0_i32_164 = arith.constant 0 : i32
      %c0_i32_165 = arith.constant 0 : i32
      %c3_i32_166 = arith.constant 3 : i32
      %c0_i32_167 = arith.constant 0 : i32
      %c0_i32_168 = arith.constant 0 : i32
      %191 = tpu.memref_slice %arg2[%c0_i32_162, %c0_i32_163, %c0_i32_167, %c0_i32_168] : memref<8x4x4x128xf32, #tpu.memory_space<any>> -> memref<1x1x4x128xf32, #tpu.memory_space<any>>
      %192 = tpu.memref_squeeze %191 : memref<1x1x4x128xf32, #tpu.memory_space<any>> -> memref<4x128xf32, #tpu.memory_space<any>>
      %c0_i32_169 = arith.constant 0 : i32
      %c0_i32_170 = arith.constant 0 : i32
      %193 = tpu.memref_slice %arg3[%c0_i32_164, %c0_i32_165, %c0_i32_169, %c0_i32_170] : memref<8x4x4x128xf32, #tpu.memory_space<any>> -> memref<1x1x4x128xf32, #tpu.memory_space<any>>
      %194 = tpu.memref_squeeze %193 : memref<1x1x4x128xf32, #tpu.memory_space<any>> -> memref<4x128xf32, #tpu.memory_space<any>>
      %195 = tpu.memref_slice %arg4[%9, %c3_i32_166] : memref<2x16x!tpu.dma_semaphore, #tpu.memory_space<semaphore_mem>> -> memref<1x1x!tpu.dma_semaphore, #tpu.memory_space<semaphore_mem>>
      %196 = tpu.memref_squeeze %195 : memref<1x1x!tpu.dma_semaphore, #tpu.memory_space<semaphore_mem>> -> memref<!tpu.dma_semaphore, #tpu.memory_space<semaphore_mem>>
      tpu.wait_dma2 semaphore(%196 : memref<!tpu.dma_semaphore, #tpu.memory_space<semaphore_mem>>) src(%192 : memref<4x128xf32, #tpu.memory_space<any>>) dst(%194 : memref<4x128xf32, #tpu.memory_space<any>>)
      %c0_i32_171 = arith.constant 0 : i32
      %c0_i32_172 = arith.constant 0 : i32
      %c0_i32_173 = arith.constant 0 : i32
      %c0_i32_174 = arith.constant 0 : i32
      %c4_i32_175 = arith.constant 4 : i32
      %c0_i32_176 = arith.constant 0 : i32
      %c0_i32_177 = arith.constant 0 : i32
      %197 = tpu.memref_slice %arg2[%c0_i32_171, %c0_i32_172, %c0_i32_176, %c0_i32_177] : memref<8x4x4x128xf32, #tpu.memory_space<any>> -> memref<1x1x4x128xf32, #tpu.memory_space<any>>
      %198 = tpu.memref_squeeze %197 : memref<1x1x4x128xf32, #tpu.memory_space<any>> -> memref<4x128xf32, #tpu.memory_space<any>>
      %c0_i32_178 = arith.constant 0 : i32
      %c0_i32_179 = arith.constant 0 : i32
      %199 = tpu.memref_slice %arg3[%c0_i32_173, %c0_i32_174, %c0_i32_178, %c0_i32_179] : memref<8x4x4x128xf32, #tpu.memory_space<any>> -> memref<1x1x4x128xf32, #tpu.memory_space<any>>
      %200 = tpu.memref_squeeze %199 : memref<1x1x4x128xf32, #tpu.memory_space<any>> -> memref<4x128xf32, #tpu.memory_space<any>>
      %201 = tpu.memref_slice %arg4[%9, %c4_i32_175] : memref<2x16x!tpu.dma_semaphore, #tpu.memory_space<semaphore_mem>> -> memref<1x1x!tpu.dma_semaphore, #tpu.memory_space<semaphore_mem>>
      %202 = tpu.memref_squeeze %201 : memref<1x1x!tpu.dma_semaphore, #tpu.memory_space<semaphore_mem>> -> memref<!tpu.dma_semaphore, #tpu.memory_space<semaphore_mem>>
      tpu.wait_dma2 semaphore(%202 : memref<!tpu.dma_semaphore, #tpu.memory_space<semaphore_mem>>) src(%198 : memref<4x128xf32, #tpu.memory_space<any>>) dst(%200 : memref<4x128xf32, #tpu.memory_space<any>>)
      %c0_i32_180 = arith.constant 0 : i32
      %c0_i32_181 = arith.constant 0 : i32
      %c0_i32_182 = arith.constant 0 : i32
      %c0_i32_183 = arith.constant 0 : i32
      %c5_i32_184 = arith.constant 5 : i32
      %c0_i32_185 = arith.constant 0 : i32
      %c0_i32_186 = arith.constant 0 : i32
      %203 = tpu.memref_slice %arg2[%c0_i32_180, %c0_i32_181, %c0_i32_185, %c0_i32_186] : memref<8x4x4x128xf32, #tpu.memory_space<any>> -> memref<1x1x4x128xf32, #tpu.memory_space<any>>
      %204 = tpu.memref_squeeze %203 : memref<1x1x4x128xf32, #tpu.memory_space<any>> -> memref<4x128xf32, #tpu.memory_space<any>>
      %c0_i32_187 = arith.constant 0 : i32
      %c0_i32_188 = arith.constant 0 : i32
      %205 = tpu.memref_slice %arg3[%c0_i32_182, %c0_i32_183, %c0_i32_187, %c0_i32_188] : memref<8x4x4x128xf32, #tpu.memory_space<any>> -> memref<1x1x4x128xf32, #tpu.memory_space<any>>
      %206 = tpu.memref_squeeze %205 : memref<1x1x4x128xf32, #tpu.memory_space<any>> -> memref<4x128xf32, #tpu.memory_space<any>>
      %207 = tpu.memref_slice %arg4[%9, %c5_i32_184] : memref<2x16x!tpu.dma_semaphore, #tpu.memory_space<semaphore_mem>> -> memref<1x1x!tpu.dma_semaphore, #tpu.memory_space<semaphore_mem>>
      %208 = tpu.memref_squeeze %207 : memref<1x1x!tpu.dma_semaphore, #tpu.memory_space<semaphore_mem>> -> memref<!tpu.dma_semaphore, #tpu.memory_space<semaphore_mem>>
      tpu.wait_dma2 semaphore(%208 : memref<!tpu.dma_semaphore, #tpu.memory_space<semaphore_mem>>) src(%204 : memref<4x128xf32, #tpu.memory_space<any>>) dst(%206 : memref<4x128xf32, #tpu.memory_space<any>>)
      %c0_i32_189 = arith.constant 0 : i32
      %c0_i32_190 = arith.constant 0 : i32
      %c0_i32_191 = arith.constant 0 : i32
      %c0_i32_192 = arith.constant 0 : i32
      %c6_i32_193 = arith.constant 6 : i32
      %c0_i32_194 = arith.constant 0 : i32
      %c0_i32_195 = arith.constant 0 : i32
      %209 = tpu.memref_slice %arg2[%c0_i32_189, %c0_i32_190, %c0_i32_194, %c0_i32_195] : memref<8x4x4x128xf32, #tpu.memory_space<any>> -> memref<1x1x4x128xf32, #tpu.memory_space<any>>
      %210 = tpu.memref_squeeze %209 : memref<1x1x4x128xf32, #tpu.memory_space<any>> -> memref<4x128xf32, #tpu.memory_space<any>>
      %c0_i32_196 = arith.constant 0 : i32
      %c0_i32_197 = arith.constant 0 : i32
      %211 = tpu.memref_slice %arg3[%c0_i32_191, %c0_i32_192, %c0_i32_196, %c0_i32_197] : memref<8x4x4x128xf32, #tpu.memory_space<any>> -> memref<1x1x4x128xf32, #tpu.memory_space<any>>
      %212 = tpu.memref_squeeze %211 : memref<1x1x4x128xf32, #tpu.memory_space<any>> -> memref<4x128xf32, #tpu.memory_space<any>>
      %213 = tpu.memref_slice %arg4[%9, %c6_i32_193] : memref<2x16x!tpu.dma_semaphore, #tpu.memory_space<semaphore_mem>> -> memref<1x1x!tpu.dma_semaphore, #tpu.memory_space<semaphore_mem>>
      %214 = tpu.memref_squeeze %213 : memref<1x1x!tpu.dma_semaphore, #tpu.memory_space<semaphore_mem>> -> memref<!tpu.dma_semaphore, #tpu.memory_space<semaphore_mem>>
      tpu.wait_dma2 semaphore(%214 : memref<!tpu.dma_semaphore, #tpu.memory_space<semaphore_mem>>) src(%210 : memref<4x128xf32, #tpu.memory_space<any>>) dst(%212 : memref<4x128xf32, #tpu.memory_space<any>>)
      %c0_i32_198 = arith.constant 0 : i32
      %c0_i32_199 = arith.constant 0 : i32
      %c0_i32_200 = arith.constant 0 : i32
      %c0_i32_201 = arith.constant 0 : i32
      %c7_i32_202 = arith.constant 7 : i32
      %c0_i32_203 = arith.constant 0 : i32
      %c0_i32_204 = arith.constant 0 : i32
      %215 = tpu.memref_slice %arg2[%c0_i32_198, %c0_i32_199, %c0_i32_203, %c0_i32_204] : memref<8x4x4x128xf32, #tpu.memory_space<any>> -> memref<1x1x4x128xf32, #tpu.memory_space<any>>
      %216 = tpu.memref_squeeze %215 : memref<1x1x4x128xf32, #tpu.memory_space<any>> -> memref<4x128xf32, #tpu.memory_space<any>>
      %c0_i32_205 = arith.constant 0 : i32
      %c0_i32_206 = arith.constant 0 : i32
      %217 = tpu.memref_slice %arg3[%c0_i32_200, %c0_i32_201, %c0_i32_205, %c0_i32_206] : memref<8x4x4x128xf32, #tpu.memory_space<any>> -> memref<1x1x4x128xf32, #tpu.memory_space<any>>
      %218 = tpu.memref_squeeze %217 : memref<1x1x4x128xf32, #tpu.memory_space<any>> -> memref<4x128xf32, #tpu.memory_space<any>>
      %219 = tpu.memref_slice %arg4[%9, %c7_i32_202] : memref<2x16x!tpu.dma_semaphore, #tpu.memory_space<semaphore_mem>> -> memref<1x1x!tpu.dma_semaphore, #tpu.memory_space<semaphore_mem>>
      %220 = tpu.memref_squeeze %219 : memref<1x1x!tpu.dma_semaphore, #tpu.memory_space<semaphore_mem>> -> memref<!tpu.dma_semaphore, #tpu.memory_space<semaphore_mem>>
      tpu.wait_dma2 semaphore(%220 : memref<!tpu.dma_semaphore, #tpu.memory_space<semaphore_mem>>) src(%216 : memref<4x128xf32, #tpu.memory_space<any>>) dst(%218 : memref<4x128xf32, #tpu.memory_space<any>>)
      %c0_i32_207 = arith.constant 0 : i32
      %c0_i32_208 = arith.constant 0 : i32
      %c0_i32_209 = arith.constant 0 : i32
      %c0_i32_210 = arith.constant 0 : i32
      %c8_i32_211 = arith.constant 8 : i32
      %c0_i32_212 = arith.constant 0 : i32
      %c0_i32_213 = arith.constant 0 : i32
      %221 = tpu.memref_slice %arg2[%c0_i32_207, %c0_i32_208, %c0_i32_212, %c0_i32_213] : memref<8x4x4x128xf32, #tpu.memory_space<any>> -> memref<1x1x4x128xf32, #tpu.memory_space<any>>
      %222 = tpu.memref_squeeze %221 : memref<1x1x4x128xf32, #tpu.memory_space<any>> -> memref<4x128xf32, #tpu.memory_space<any>>
      %c0_i32_214 = arith.constant 0 : i32
      %c0_i32_215 = arith.constant 0 : i32
      %223 = tpu.memref_slice %arg3[%c0_i32_209, %c0_i32_210, %c0_i32_214, %c0_i32_215] : memref<8x4x4x128xf32, #tpu.memory_space<any>> -> memref<1x1x4x128xf32, #tpu.memory_space<any>>
      %224 = tpu.memref_squeeze %223 : memref<1x1x4x128xf32, #tpu.memory_space<any>> -> memref<4x128xf32, #tpu.memory_space<any>>
      %225 = tpu.memref_slice %arg4[%9, %c8_i32_211] : memref<2x16x!tpu.dma_semaphore, #tpu.memory_space<semaphore_mem>> -> memref<1x1x!tpu.dma_semaphore, #tpu.memory_space<semaphore_mem>>
      %226 = tpu.memref_squeeze %225 : memref<1x1x!tpu.dma_semaphore, #tpu.memory_space<semaphore_mem>> -> memref<!tpu.dma_semaphore, #tpu.memory_space<semaphore_mem>>
      tpu.wait_dma2 semaphore(%226 : memref<!tpu.dma_semaphore, #tpu.memory_space<semaphore_mem>>) src(%222 : memref<4x128xf32, #tpu.memory_space<any>>) dst(%224 : memref<4x128xf32, #tpu.memory_space<any>>)
      %c0_i32_216 = arith.constant 0 : i32
      %c0_i32_217 = arith.constant 0 : i32
      %c0_i32_218 = arith.constant 0 : i32
      %c0_i32_219 = arith.constant 0 : i32
      %c9_i32_220 = arith.constant 9 : i32
      %c0_i32_221 = arith.constant 0 : i32
      %c0_i32_222 = arith.constant 0 : i32
      %227 = tpu.memref_slice %arg2[%c0_i32_216, %c0_i32_217, %c0_i32_221, %c0_i32_222] : memref<8x4x4x128xf32, #tpu.memory_space<any>> -> memref<1x1x4x128xf32, #tpu.memory_space<any>>
      %228 = tpu.memref_squeeze %227 : memref<1x1x4x128xf32, #tpu.memory_space<any>> -> memref<4x128xf32, #tpu.memory_space<any>>
      %c0_i32_223 = arith.constant 0 : i32
      %c0_i32_224 = arith.constant 0 : i32
      %229 = tpu.memref_slice %arg3[%c0_i32_218, %c0_i32_219, %c0_i32_223, %c0_i32_224] : memref<8x4x4x128xf32, #tpu.memory_space<any>> -> memref<1x1x4x128xf32, #tpu.memory_space<any>>
      %230 = tpu.memref_squeeze %229 : memref<1x1x4x128xf32, #tpu.memory_space<any>> -> memref<4x128xf32, #tpu.memory_space<any>>
      %231 = tpu.memref_slice %arg4[%9, %c9_i32_220] : memref<2x16x!tpu.dma_semaphore, #tpu.memory_space<semaphore_mem>> -> memref<1x1x!tpu.dma_semaphore, #tpu.memory_space<semaphore_mem>>
      %232 = tpu.memref_squeeze %231 : memref<1x1x!tpu.dma_semaphore, #tpu.memory_space<semaphore_mem>> -> memref<!tpu.dma_semaphore, #tpu.memory_space<semaphore_mem>>
      tpu.wait_dma2 semaphore(%232 : memref<!tpu.dma_semaphore, #tpu.memory_space<semaphore_mem>>) src(%228 : memref<4x128xf32, #tpu.memory_space<any>>) dst(%230 : memref<4x128xf32, #tpu.memory_space<any>>)
      %c0_i32_225 = arith.constant 0 : i32
      %c0_i32_226 = arith.constant 0 : i32
      %c0_i32_227 = arith.constant 0 : i32
      %c0_i32_228 = arith.constant 0 : i32
      %c10_i32_229 = arith.constant 10 : i32
      %c0_i32_230 = arith.constant 0 : i32
      %c0_i32_231 = arith.constant 0 : i32
      %233 = tpu.memref_slice %arg2[%c0_i32_225, %c0_i32_226, %c0_i32_230, %c0_i32_231] : memref<8x4x4x128xf32, #tpu.memory_space<any>> -> memref<1x1x4x128xf32, #tpu.memory_space<any>>
      %234 = tpu.memref_squeeze %233 : memref<1x1x4x128xf32, #tpu.memory_space<any>> -> memref<4x128xf32, #tpu.memory_space<any>>
      %c0_i32_232 = arith.constant 0 : i32
      %c0_i32_233 = arith.constant 0 : i32
      %235 = tpu.memref_slice %arg3[%c0_i32_227, %c0_i32_228, %c0_i32_232, %c0_i32_233] : memref<8x4x4x128xf32, #tpu.memory_space<any>> -> memref<1x1x4x128xf32, #tpu.memory_space<any>>
      %236 = tpu.memref_squeeze %235 : memref<1x1x4x128xf32, #tpu.memory_space<any>> -> memref<4x128xf32, #tpu.memory_space<any>>
      %237 = tpu.memref_slice %arg4[%9, %c10_i32_229] : memref<2x16x!tpu.dma_semaphore, #tpu.memory_space<semaphore_mem>> -> memref<1x1x!tpu.dma_semaphore, #tpu.memory_space<semaphore_mem>>
      %238 = tpu.memref_squeeze %237 : memref<1x1x!tpu.dma_semaphore, #tpu.memory_space<semaphore_mem>> -> memref<!tpu.dma_semaphore, #tpu.memory_space<semaphore_mem>>
      tpu.wait_dma2 semaphore(%238 : memref<!tpu.dma_semaphore, #tpu.memory_space<semaphore_mem>>) src(%234 : memref<4x128xf32, #tpu.memory_space<any>>) dst(%236 : memref<4x128xf32, #tpu.memory_space<any>>)
      %c0_i32_234 = arith.constant 0 : i32
      %c0_i32_235 = arith.constant 0 : i32
      %c0_i32_236 = arith.constant 0 : i32
      %c0_i32_237 = arith.constant 0 : i32
      %c11_i32_238 = arith.constant 11 : i32
      %c0_i32_239 = arith.constant 0 : i32
      %c0_i32_240 = arith.constant 0 : i32
      %239 = tpu.memref_slice %arg2[%c0_i32_234, %c0_i32_235, %c0_i32_239, %c0_i32_240] : memref<8x4x4x128xf32, #tpu.memory_space<any>> -> memref<1x1x4x128xf32, #tpu.memory_space<any>>
      %240 = tpu.memref_squeeze %239 : memref<1x1x4x128xf32, #tpu.memory_space<any>> -> memref<4x128xf32, #tpu.memory_space<any>>
      %c0_i32_241 = arith.constant 0 : i32
      %c0_i32_242 = arith.constant 0 : i32
      %241 = tpu.memref_slice %arg3[%c0_i32_236, %c0_i32_237, %c0_i32_241, %c0_i32_242] : memref<8x4x4x128xf32, #tpu.memory_space<any>> -> memref<1x1x4x128xf32, #tpu.memory_space<any>>
      %242 = tpu.memref_squeeze %241 : memref<1x1x4x128xf32, #tpu.memory_space<any>> -> memref<4x128xf32, #tpu.memory_space<any>>
      %243 = tpu.memref_slice %arg4[%9, %c11_i32_238] : memref<2x16x!tpu.dma_semaphore, #tpu.memory_space<semaphore_mem>> -> memref<1x1x!tpu.dma_semaphore, #tpu.memory_space<semaphore_mem>>
      %244 = tpu.memref_squeeze %243 : memref<1x1x!tpu.dma_semaphore, #tpu.memory_space<semaphore_mem>> -> memref<!tpu.dma_semaphore, #tpu.memory_space<semaphore_mem>>
      tpu.wait_dma2 semaphore(%244 : memref<!tpu.dma_semaphore, #tpu.memory_space<semaphore_mem>>) src(%240 : memref<4x128xf32, #tpu.memory_space<any>>) dst(%242 : memref<4x128xf32, #tpu.memory_space<any>>)
      %c0_i32_243 = arith.constant 0 : i32
      %c0_i32_244 = arith.constant 0 : i32
      %c0_i32_245 = arith.constant 0 : i32
      %c0_i32_246 = arith.constant 0 : i32
      %c12_i32_247 = arith.constant 12 : i32
      %c0_i32_248 = arith.constant 0 : i32
      %c0_i32_249 = arith.constant 0 : i32
      %245 = tpu.memref_slice %arg2[%c0_i32_243, %c0_i32_244, %c0_i32_248, %c0_i32_249] : memref<8x4x4x128xf32, #tpu.memory_space<any>> -> memref<1x1x4x128xf32, #tpu.memory_space<any>>
      %246 = tpu.memref_squeeze %245 : memref<1x1x4x128xf32, #tpu.memory_space<any>> -> memref<4x128xf32, #tpu.memory_space<any>>
      %c0_i32_250 = arith.constant 0 : i32
      %c0_i32_251 = arith.constant 0 : i32
      %247 = tpu.memref_slice %arg3[%c0_i32_245, %c0_i32_246, %c0_i32_250, %c0_i32_251] : memref<8x4x4x128xf32, #tpu.memory_space<any>> -> memref<1x1x4x128xf32, #tpu.memory_space<any>>
      %248 = tpu.memref_squeeze %247 : memref<1x1x4x128xf32, #tpu.memory_space<any>> -> memref<4x128xf32, #tpu.memory_space<any>>
      %249 = tpu.memref_slice %arg4[%9, %c12_i32_247] : memref<2x16x!tpu.dma_semaphore, #tpu.memory_space<semaphore_mem>> -> memref<1x1x!tpu.dma_semaphore, #tpu.memory_space<semaphore_mem>>
      %250 = tpu.memref_squeeze %249 : memref<1x1x!tpu.dma_semaphore, #tpu.memory_space<semaphore_mem>> -> memref<!tpu.dma_semaphore, #tpu.memory_space<semaphore_mem>>
      tpu.wait_dma2 semaphore(%250 : memref<!tpu.dma_semaphore, #tpu.memory_space<semaphore_mem>>) src(%246 : memref<4x128xf32, #tpu.memory_space<any>>) dst(%248 : memref<4x128xf32, #tpu.memory_space<any>>)
      %c0_i32_252 = arith.constant 0 : i32
      %c0_i32_253 = arith.constant 0 : i32
      %c0_i32_254 = arith.constant 0 : i32
      %c0_i32_255 = arith.constant 0 : i32
      %c13_i32_256 = arith.constant 13 : i32
      %c0_i32_257 = arith.constant 0 : i32
      %c0_i32_258 = arith.constant 0 : i32
      %251 = tpu.memref_slice %arg2[%c0_i32_252, %c0_i32_253, %c0_i32_257, %c0_i32_258] : memref<8x4x4x128xf32, #tpu.memory_space<any>> -> memref<1x1x4x128xf32, #tpu.memory_space<any>>
      %252 = tpu.memref_squeeze %251 : memref<1x1x4x128xf32, #tpu.memory_space<any>> -> memref<4x128xf32, #tpu.memory_space<any>>
      %c0_i32_259 = arith.constant 0 : i32
      %c0_i32_260 = arith.constant 0 : i32
      %253 = tpu.memref_slice %arg3[%c0_i32_254, %c0_i32_255, %c0_i32_259, %c0_i32_260] : memref<8x4x4x128xf32, #tpu.memory_space<any>> -> memref<1x1x4x128xf32, #tpu.memory_space<any>>
      %254 = tpu.memref_squeeze %253 : memref<1x1x4x128xf32, #tpu.memory_space<any>> -> memref<4x128xf32, #tpu.memory_space<any>>
      %255 = tpu.memref_slice %arg4[%9, %c13_i32_256] : memref<2x16x!tpu.dma_semaphore, #tpu.memory_space<semaphore_mem>> -> memref<1x1x!tpu.dma_semaphore, #tpu.memory_space<semaphore_mem>>
      %256 = tpu.memref_squeeze %255 : memref<1x1x!tpu.dma_semaphore, #tpu.memory_space<semaphore_mem>> -> memref<!tpu.dma_semaphore, #tpu.memory_space<semaphore_mem>>
      tpu.wait_dma2 semaphore(%256 : memref<!tpu.dma_semaphore, #tpu.memory_space<semaphore_mem>>) src(%252 : memref<4x128xf32, #tpu.memory_space<any>>) dst(%254 : memref<4x128xf32, #tpu.memory_space<any>>)
      %c0_i32_261 = arith.constant 0 : i32
      %c0_i32_262 = arith.constant 0 : i32
      %c0_i32_263 = arith.constant 0 : i32
      %c0_i32_264 = arith.constant 0 : i32
      %c14_i32_265 = arith.constant 14 : i32
      %c0_i32_266 = arith.constant 0 : i32
      %c0_i32_267 = arith.constant 0 : i32
      %257 = tpu.memref_slice %arg2[%c0_i32_261, %c0_i32_262, %c0_i32_266, %c0_i32_267] : memref<8x4x4x128xf32, #tpu.memory_space<any>> -> memref<1x1x4x128xf32, #tpu.memory_space<any>>
      %258 = tpu.memref_squeeze %257 : memref<1x1x4x128xf32, #tpu.memory_space<any>> -> memref<4x128xf32, #tpu.memory_space<any>>
      %c0_i32_268 = arith.constant 0 : i32
      %c0_i32_269 = arith.constant 0 : i32
      %259 = tpu.memref_slice %arg3[%c0_i32_263, %c0_i32_264, %c0_i32_268, %c0_i32_269] : memref<8x4x4x128xf32, #tpu.memory_space<any>> -> memref<1x1x4x128xf32, #tpu.memory_space<any>>
      %260 = tpu.memref_squeeze %259 : memref<1x1x4x128xf32, #tpu.memory_space<any>> -> memref<4x128xf32, #tpu.memory_space<any>>
      %261 = tpu.memref_slice %arg4[%9, %c14_i32_265] : memref<2x16x!tpu.dma_semaphore, #tpu.memory_space<semaphore_mem>> -> memref<1x1x!tpu.dma_semaphore, #tpu.memory_space<semaphore_mem>>
      %262 = tpu.memref_squeeze %261 : memref<1x1x!tpu.dma_semaphore, #tpu.memory_space<semaphore_mem>> -> memref<!tpu.dma_semaphore, #tpu.memory_space<semaphore_mem>>
      tpu.wait_dma2 semaphore(%262 : memref<!tpu.dma_semaphore, #tpu.memory_space<semaphore_mem>>) src(%258 : memref<4x128xf32, #tpu.memory_space<any>>) dst(%260 : memref<4x128xf32, #tpu.memory_space<any>>)
      %c0_i32_270 = arith.constant 0 : i32
      %c0_i32_271 = arith.constant 0 : i32
      %c0_i32_272 = arith.constant 0 : i32
      %c0_i32_273 = arith.constant 0 : i32
      %c15_i32_274 = arith.constant 15 : i32
      %c0_i32_275 = arith.constant 0 : i32
      %c0_i32_276 = arith.constant 0 : i32
      %263 = tpu.memref_slice %arg2[%c0_i32_270, %c0_i32_271, %c0_i32_275, %c0_i32_276] : memref<8x4x4x128xf32, #tpu.memory_space<any>> -> memref<1x1x4x128xf32, #tpu.memory_space<any>>
      %264 = tpu.memref_squeeze %263 : memref<1x1x4x128xf32, #tpu.memory_space<any>> -> memref<4x128xf32, #tpu.memory_space<any>>
      %c0_i32_277 = arith.constant 0 : i32
      %c0_i32_278 = arith.constant 0 : i32
      %265 = tpu.memref_slice %arg3[%c0_i32_272, %c0_i32_273, %c0_i32_277, %c0_i32_278] : memref<8x4x4x128xf32, #tpu.memory_space<any>> -> memref<1x1x4x128xf32, #tpu.memory_space<any>>
      %266 = tpu.memref_squeeze %265 : memref<1x1x4x128xf32, #tpu.memory_space<any>> -> memref<4x128xf32, #tpu.memory_space<any>>
      %267 = tpu.memref_slice %arg4[%9, %c15_i32_274] : memref<2x16x!tpu.dma_semaphore, #tpu.memory_space<semaphore_mem>> -> memref<1x1x!tpu.dma_semaphore, #tpu.memory_space<semaphore_mem>>
      %268 = tpu.memref_squeeze %267 : memref<1x1x!tpu.dma_semaphore, #tpu.memory_space<semaphore_mem>> -> memref<!tpu.dma_semaphore, #tpu.memory_space<semaphore_mem>>
      tpu.wait_dma2 semaphore(%268 : memref<!tpu.dma_semaphore, #tpu.memory_space<semaphore_mem>>) src(%264 : memref<4x128xf32, #tpu.memory_space<any>>) dst(%266 : memref<4x128xf32, #tpu.memory_space<any>>)
    } else {
    }
    return
  }
}

</mosaic_0001>

<llo_original>
// kernel: tpu_custom_call.1
$region0: #{tpu_custom_call.1}
  #allocation0 [shape = 'u32[]', space=smem, size = 0x4, offset = 0x4, fixed_abs, tag = 'smem constant byte address 0x4 - core index']
  #allocation1 [shape = 'u32[144,128]{1,0:T(1,128)}', space=vmem, size = 0x12000, scoped, tag = 'internal scratch']
  #allocation2 [shape = 's32[32]{0}', space=sflag, size = 0x80, scoped, tag = 'scratch operand']
  #allocation3 [shape = 's32[1]{0}', space=sflag, size = 0x4, scoped, tag = 'scoped memory for tpu_custom_call.1']
  #allocation4 [shape = 'u8[512]{0}', space=smem, size = 0x200, scoped, tag = 'prefetched SMEM operand 0']
  #allocation5 [shape = 's32[]', space=sflag, size = 0x4, offset = 0, fixed_abs, tag = 'sflag constant byte address 0x0 - dummy sync flag']
  #allocation6 [shape = 'u32[0]{0}', space=smem, size = 0, offset = 0, fixed_abs, tag = 'smem constant byte address 0x0 - null']
  #allocation7 [shape = 's32[]', space=sflag, size = 0x4, offset = 0, fixed_abs, tag = 'sflag constant byte address 0x0 - dummy sync flag']
  #allocation8 [shape = 'u32[0]{0}', space=smem, size = 0, offset = 0, fixed_abs, tag = 'smem constant byte address 0x0 - null']
  #allocation9 [shape = 's32[]', space=sflag, size = 0x4, offset = 0, fixed_abs, tag = 'sflag constant byte address 0x0 - dummy sync flag']
  #allocation10 [shape = 'u32[0]{0}', space=smem, size = 0, offset = 0, fixed_abs, tag = 'smem constant byte address 0x0 - null']
  #allocation11 [shape = 's32[]', space=sflag, size = 0x4, offset = 0, fixed_abs, tag = 'sflag constant byte address 0x0 - dummy sync flag']
  #allocation12 [shape = 'u32[0]{0}', space=smem, size = 0, offset = 0, fixed_abs, tag = 'smem constant byte address 0x0 - null']
  #allocation13 [shape = 's32[]', space=sflag, size = 0x4, offset = 0, fixed_abs, tag = 'sflag constant byte address 0x0 - dummy sync flag']
  #allocation14 [shape = 'u32[0]{0}', space=smem, size = 0, offset = 0, fixed_abs, tag = 'smem constant byte address 0x0 - null']
  #allocation15 [shape = 's32[]', space=sflag, size = 0x4, offset = 0, fixed_abs, tag = 'sflag constant byte address 0x0 - dummy sync flag']
  #allocation16 [shape = 'u32[0]{0}', space=smem, size = 0, offset = 0, fixed_abs, tag = 'smem constant byte address 0x0 - null']
  #allocation17 [shape = 's32[]', space=sflag, size = 0x4, offset = 0, fixed_abs, tag = 'sflag constant byte address 0x0 - dummy sync flag']
  #allocation18 [shape = 'u32[0]{0}', space=smem, size = 0, offset = 0, fixed_abs, tag = 'smem constant byte address 0x0 - null']
  #allocation19 [shape = 's32[]', space=sflag, size = 0x4, offset = 0, fixed_abs, tag = 'sflag constant byte address 0x0 - dummy sync flag']
  #allocation20 [shape = 'u32[0]{0}', space=smem, size = 0, offset = 0, fixed_abs, tag = 'smem constant byte address 0x0 - null']
  #allocation21 [shape = 's32[]', space=sflag, size = 0x4, offset = 0, fixed_abs, tag = 'sflag constant byte address 0x0 - dummy sync flag']
  #allocation22 [shape = 'u32[0]{0}', space=smem, size = 0, offset = 0, fixed_abs, tag = 'smem constant byte address 0x0 - null']
  #allocation23 [shape = 's32[]', space=sflag, size = 0x4, offset = 0, fixed_abs, tag = 'sflag constant byte address 0x0 - dummy sync flag']
  #allocation24 [shape = 'u32[0]{0}', space=smem, size = 0, offset = 0, fixed_abs, tag = 'smem constant byte address 0x0 - null']
  #allocation25 [shape = 's32[]', space=sflag, size = 0x4, offset = 0, fixed_abs, tag = 'sflag constant byte address 0x0 - dummy sync flag']
  #allocation26 [shape = 'u32[0]{0}', space=smem, size = 0, offset = 0, fixed_abs, tag = 'smem constant byte address 0x0 - null']
  #allocation27 [shape = 's32[]', space=sflag, size = 0x4, offset = 0, fixed_abs, tag = 'sflag constant byte address 0x0 - dummy sync flag']
  #allocation28 [shape = 'u32[0]{0}', space=smem, size = 0, offset = 0, fixed_abs, tag = 'smem constant byte address 0x0 - null']
  #allocation29 [shape = 's32[]', space=sflag, size = 0x4, offset = 0, fixed_abs, tag = 'sflag constant byte address 0x0 - dummy sync flag']
  #allocation30 [shape = 'u32[0]{0}', space=smem, size = 0, offset = 0, fixed_abs, tag = 'smem constant byte address 0x0 - null']
  #allocation31 [shape = 's32[]', space=sflag, size = 0x4, offset = 0, fixed_abs, tag = 'sflag constant byte address 0x0 - dummy sync flag']
  #allocation32 [shape = 'u32[0]{0}', space=smem, size = 0, offset = 0, fixed_abs, tag = 'smem constant byte address 0x0 - null']
  #allocation33 [shape = 's32[]', space=sflag, size = 0x4, offset = 0, fixed_abs, tag = 'sflag constant byte address 0x0 - dummy sync flag']
  #allocation34 [shape = 'u32[0]{0}', space=smem, size = 0, offset = 0, fixed_abs, tag = 'smem constant byte address 0x0 - null']
  #allocation35 [shape = 's32[]', space=sflag, size = 0x4, offset = 0, fixed_abs, tag = 'sflag constant byte address 0x0 - dummy sync flag']
  #allocation36 [shape = 'u32[0]{0}', space=smem, size = 0, offset = 0, fixed_abs, tag = 'smem constant byte address 0x0 - null']
  %s0 = inlined_call_operand.hbm [shape: s32[32], index: 0, kind: input, shape index: {}]
  %s1 = inlined_call_operand.hbm [shape: f32[8,4,4,128], index: 1, kind: input, shape index: {}]
  %s2 = inlined_call_operand.hbm [shape: f32[8,4,4,128], index: 2, kind: output, shape index: {}]
  %s3 = sld [smem:[#allocation0]]
  $region17: #{tpu_custom_call.1} parent=0
    _
  %s5 = ssub.s32 1, %s3
  %s6 = scalar_select 0, %s5, %s3
  %8 = dma.hbm_to_smem %s0, 16, [#allocation4], [#allocation3]
  %9 = dma.done [#allocation3], 16
  %10 = sfence
  loop: start=0, step=1, limit=2
  $region2: #{tpu_custom_call.1} parent=0 // loop_pre_header
    _
  $region3: #{tpu_custom_call.1} parent=0 // loop_header
    %s12 = sphi 0, %s16
    %p13 = scmp.ge.s32.totalorder %s12, 2
  $region4: #{tpu_custom_call.1} parent=0 // loop_header_branch
    %15 = sbr.rel (%p13) target = $region8
  $region5: #{tpu_custom_call.1} parent=0 // loop_body
    %s17 = sadd.s32 %s12, 1
    %p18 = scmp.lt.s32.totalorder %s12, 0
    %s19 = ssub.s32 0, %s12
    %s20 = scalar_select %p18, %s19, %s12
    %s21 = sand.u32 %s20, 1
    %s22 = ssub.s32 0, %s21
    %s23 = scalar_select %p18, %s22, %s21
    %p24 = scmp.ne.s32.totalorder %s23, 0
    %p25 = scmp.lt.s32.totalorder %s23, 0
    %p26 = pnand %p25, %p24
    %p27 = pneg %p26
    %s28 = sadd.s32 %s23, 2
    %s29 = scalar_select %p27, %s28, %s23
    %s30 = ssub.s32 1, %s29
    %s31 = smul.u32 %s12, 4
    %s32 = smul.u32 %s12, 16
    %s33 = sld [smem:[#allocation4 + %s32]]
    %s34 = smul.u32 %s33, 16
    %s35 = smul.addr %s34, 16
    %s36 = scalar_lea.hbm %s1, %s35
    %s37 = smul.u32 %s31, 16
    %s38 = smul.addr %s37, 16
    %s39 = scalar_lea.hbm %s2, %s38
    %s40 = smul.u32 %s29, 16
    %s41 = scalar_lea.sflag [#allocation2], %s40
    %s43 = sshll.u32 1, 14
    %s44 = sxor.u32 4294967295, %s43
    %48 = dma.general %s36, 64, %s39, %s41, 131072, [#allocation6], 0, 0
    %s49 = sadd.s32 %s32, 1
    %s50 = sld [smem:[#allocation4 + %s49]]
    %s51 = smul.u32 %s50, 16
    %s52 = sadd.s32 4, %s51
    %s53 = smul.addr %s52, 16
    %s54 = scalar_lea.hbm %s1, %s53
    %s55 = sadd.s32 4, %s37
    %s56 = smul.addr %s55, 16
    %s57 = scalar_lea.hbm %s2, %s56
    %s58 = sadd.s32 1, %s40
    %s59 = scalar_lea.sflag [#allocation2], %s58
    %s61 = sshll.u32 1, 14
    %s62 = sxor.u32 4294967295, %s61
    %66 = dma.general %s54, 64, %s57, %s59, 131072, [#allocation8], 0, 0
    %s67 = sadd.s32 %s32, 2
    %s68 = sld [smem:[#allocation4 + %s67]]
    %s69 = smul.u32 %s68, 16
    %s70 = sadd.s32 8, %s69
    %s71 = smul.addr %s70, 16
    %s72 = scalar_lea.hbm %s1, %s71
    %s73 = sadd.s32 8, %s37
    %s74 = smul.addr %s73, 16
    %s75 = scalar_lea.hbm %s2, %s74
    %s76 = sadd.s32 2, %s40
    %s77 = scalar_lea.sflag [#allocation2], %s76
    %s79 = sshll.u32 1, 14
    %s80 = sxor.u32 4294967295, %s79
    %84 = dma.general %s72, 64, %s75, %s77, 131072, [#allocation10], 0, 0
    %s85 = sadd.s32 %s32, 3
    %s86 = sld [smem:[#allocation4 + %s85]]
    %s87 = smul.u32 %s86, 16
    %s88 = sadd.s32 12, %s87
    %s89 = smul.addr %s88, 16
    %s90 = scalar_lea.hbm %s1, %s89
    %s91 = sadd.s32 12, %s37
    %s92 = smul.addr %s91, 16
    %s93 = scalar_lea.hbm %s2, %s92
    %s94 = sadd.s32 3, %s40
    %s95 = scalar_lea.sflag [#allocation2], %s94
    %s97 = sshll.u32 1, 14
    %s98 = sxor.u32 4294967295, %s97
    %102 = dma.general %s90, 64, %s93, %s95, 131072, [#allocation12], 0, 0
    %s103 = sadd.s32 %s31, 1
    %s104 = smul.u32 %s103, 4
    %s105 = sld [smem:[#allocation4 + %s104]]
    %s106 = smul.u32 %s105, 16
    %s107 = smul.addr %s106, 16
    %s108 = scalar_lea.hbm %s1, %s107
    %s109 = smul.u32 %s103, 16
    %s110 = smul.addr %s109, 16
    %s111 = scalar_lea.hbm %s2, %s110
    %s112 = sadd.s32 4, %s40
    %s113 = scalar_lea.sflag [#allocation2], %s112
    %s115 = sshll.u32 1, 14
    %s116 = sxor.u32 4294967295, %s115
    %120 = dma.general %s108, 64, %s111, %s113, 131072, [#allocation14], 0, 0
    %s121 = sadd.s32 %s104, 1
    %s122 = sld [smem:[#allocation4 + %s121]]
    %s123 = smul.u32 %s122, 16
    %s124 = sadd.s32 4, %s123
    %s125 = smul.addr %s124, 16
    %s126 = scalar_lea.hbm %s1, %s125
    %s127 = sadd.s32 4, %s109
    %s128 = smul.addr %s127, 16
    %s129 = scalar_lea.hbm %s2, %s128
    %s130 = sadd.s32 5, %s40
    %s131 = scalar_lea.sflag [#allocation2], %s130
    %s133 = sshll.u32 1, 14
    %s134 = sxor.u32 4294967295, %s133
    %138 = dma.general %s126, 64, %s129, %s131, 131072, [#allocation16], 0, 0
    %s139 = sadd.s32 %s104, 2
    %s140 = sld [smem:[#allocation4 + %s139]]
    %s141 = smul.u32 %s140, 16
    %s142 = sadd.s32 8, %s141
    %s143 = smul.addr %s142, 16
    %s144 = scalar_lea.hbm %s1, %s143
    %s145 = sadd.s32 8, %s109
    %s146 = smul.addr %s145, 16
    %s147 = scalar_lea.hbm %s2, %s146
    %s148 = sadd.s32 6, %s40
    %s149 = scalar_lea.sflag [#allocation2], %s148
    %s151 = sshll.u32 1, 14
    %s152 = sxor.u32 4294967295, %s151
    %156 = dma.general %s144, 64, %s147, %s149, 131072, [#allocation18], 0, 0
    %s157 = sadd.s32 %s104, 3
    %s158 = sld [smem:[#allocation4 + %s157]]
    %s159 = smul.u32 %s158, 16
    %s160 = sadd.s32 12, %s159
    %s161 = smul.addr %s160, 16
    %s162 = scalar_lea.hbm %s1, %s161
    %s163 = sadd.s32 12, %s109
    %s164 = smul.addr %s163, 16
    %s165 = scalar_lea.hbm %s2, %s164
    %s166 = sadd.s32 7, %s40
    %s167 = scalar_lea.sflag [#allocation2], %s166
    %s169 = sshll.u32 1, 14
    %s170 = sxor.u32 4294967295, %s169
    %174 = dma.general %s162, 64, %s165, %s167, 131072, [#allocation20], 0, 0
    %s175 = sadd.s32 %s31, 2
    %s176 = smul.u32 %s175, 4
    %s177 = sld [smem:[#allocation4 + %s176]]
    %s178 = smul.u32 %s177, 16
    %s179 = smul.addr %s178, 16
    %s180 = scalar_lea.hbm %s1, %s179
    %s181 = smul.u32 %s175, 16
    %s182 = smul.addr %s181, 16
    %s183 = scalar_lea.hbm %s2, %s182
    %s184 = sadd.s32 8, %s40
    %s185 = scalar_lea.sflag [#allocation2], %s184
    %s187 = sshll.u32 1, 14
    %s188 = sxor.u32 4294967295, %s187
    %192 = dma.general %s180, 64, %s183, %s185, 131072, [#allocation22], 0, 0
    %s193 = sadd.s32 %s176, 1
    %s194 = sld [smem:[#allocation4 + %s193]]
    %s195 = smul.u32 %s194, 16
    %s196 = sadd.s32 4, %s195
    %s197 = smul.addr %s196, 16
    %s198 = scalar_lea.hbm %s1, %s197
    %s199 = sadd.s32 4, %s181
    %s200 = smul.addr %s199, 16
    %s201 = scalar_lea.hbm %s2, %s200
    %s202 = sadd.s32 9, %s40
    %s203 = scalar_lea.sflag [#allocation2], %s202
    %s205 = sshll.u32 1, 14
    %s206 = sxor.u32 4294967295, %s205
    %210 = dma.general %s198, 64, %s201, %s203, 131072, [#allocation24], 0, 0
    %s211 = sadd.s32 %s176, 2
    %s212 = sld [smem:[#allocation4 + %s211]]
    %s213 = smul.u32 %s212, 16
    %s214 = sadd.s32 8, %s213
    %s215 = smul.addr %s214, 16
    %s216 = scalar_lea.hbm %s1, %s215
    %s217 = sadd.s32 8, %s181
    %s218 = smul.addr %s217, 16
    %s219 = scalar_lea.hbm %s2, %s218
    %s220 = sadd.s32 10, %s40
    %s221 = scalar_lea.sflag [#allocation2], %s220
    %s223 = sshll.u32 1, 14
    %s224 = sxor.u32 4294967295, %s223
    %228 = dma.general %s216, 64, %s219, %s221, 131072, [#allocation26], 0, 0
    %s229 = sadd.s32 %s176, 3
    %s230 = sld [smem:[#allocation4 + %s229]]
    %s231 = smul.u32 %s230, 16
    %s232 = sadd.s32 12, %s231
    %s233 = smul.addr %s232, 16
    %s234 = scalar_lea.hbm %s1, %s233
    %s235 = sadd.s32 12, %s181
    %s236 = smul.addr %s235, 16
    %s237 = scalar_lea.hbm %s2, %s236
    %s238 = sadd.s32 11, %s40
    %s239 = scalar_lea.sflag [#allocation2], %s238
    %s241 = sshll.u32 1, 14
    %s242 = sxor.u32 4294967295, %s241
    %246 = dma.general %s234, 64, %s237, %s239, 131072, [#allocation28], 0, 0
    %s247 = sadd.s32 %s31, 3
    %s248 = smul.u32 %s247, 4
    %s249 = sld [smem:[#allocation4 + %s248]]
    %s250 = smul.u32 %s249, 16
    %s251 = smul.addr %s250, 16
    %s252 = scalar_lea.hbm %s1, %s251
    %s253 = smul.u32 %s247, 16
    %s254 = smul.addr %s253, 16
    %s255 = scalar_lea.hbm %s2, %s254
    %s256 = sadd.s32 12, %s40
    %s257 = scalar_lea.sflag [#allocation2], %s256
    %s259 = sshll.u32 1, 14
    %s260 = sxor.u32 4294967295, %s259
    %264 = dma.general %s252, 64, %s255, %s257, 131072, [#allocation30], 0, 0
    %s265 = sadd.s32 %s248, 1
    %s266 = sld [smem:[#allocation4 + %s265]]
    %s267 = smul.u32 %s266, 16
    %s268 = sadd.s32 4, %s267
    %s269 = smul.addr %s268, 16
    %s270 = scalar_lea.hbm %s1, %s269
    %s271 = sadd.s32 4, %s253
    %s272 = smul.addr %s271, 16
    %s273 = scalar_lea.hbm %s2, %s272
    %s274 = sadd.s32 13, %s40
    %s275 = scalar_lea.sflag [#allocation2], %s274
    %s277 = sshll.u32 1, 14
    %s278 = sxor.u32 4294967295, %s277
    %282 = dma.general %s270, 64, %s273, %s275, 131072, [#allocation32], 0, 0
    %s283 = sadd.s32 %s248, 2
    %s284 = sld [smem:[#allocation4 + %s283]]
    %s285 = smul.u32 %s284, 16
    %s286 = sadd.s32 8, %s285
    %s287 = smul.addr %s286, 16
    %s288 = scalar_lea.hbm %s1, %s287
    %s289 = sadd.s32 8, %s253
    %s290 = smul.addr %s289, 16
    %s291 = scalar_lea.hbm %s2, %s290
    %s292 = sadd.s32 14, %s40
    %s293 = scalar_lea.sflag [#allocation2], %s292
    %s295 = sshll.u32 1, 14
    %s296 = sxor.u32 4294967295, %s295
    %300 = dma.general %s288, 64, %s291, %s293, 131072, [#allocation34], 0, 0
    %s301 = sadd.s32 %s248, 3
    %s302 = sld [smem:[#allocation4 + %s301]]
    %s303 = smul.u32 %s302, 16
    %s304 = sadd.s32 12, %s303
    %s305 = smul.addr %s304, 16
    %s306 = scalar_lea.hbm %s1, %s305
    %s307 = sadd.s32 12, %s253
    %s308 = smul.addr %s307, 16
    %s309 = scalar_lea.hbm %s2, %s308
    %s310 = sadd.s32 15, %s40
    %s311 = scalar_lea.sflag [#allocation2], %s310
    %s313 = sshll.u32 1, 14
    %s314 = sxor.u32 4294967295, %s313
    %318 = dma.general %s306, 64, %s309, %s311, 131072, [#allocation36], 0, 0
    %p319 = scmp.gt.s32.totalorder %s12, 0
    // Predicated region
    $region9: #{tpu_custom_call.1} parent=5 // pred_check
      %p320 = pneg %p319
    $region10: #{tpu_custom_call.1} parent=5 // pred_check_branch
      %322 = sbr.rel (%p320) target = $region12
    $region11: #{tpu_custom_call.1} parent=5 // pred_region
      %s323 = smul.u32 %s30, 16
      %s324 = scalar_lea.sflag [#allocation2], %s323
      %s325 = smul.u32 4, 1
      %s326 = sshll.u32 %s325, 4
      %327 = dma.done %s324, %s326
      %s328 = sadd.s32 1, %s323
      %s329 = scalar_lea.sflag [#allocation2], %s328
      %s330 = sshll.u32 %s325, 4
      %331 = dma.done %s329, %s330
      %s332 = sadd.s32 2, %s323
      %s333 = scalar_lea.sflag [#allocation2], %s332
      %s334 = sshll.u32 %s325, 4
      %335 = dma.done %s333, %s334
      %s336 = sadd.s32 3, %s323
      %s337 = scalar_lea.sflag [#allocation2], %s336
      %s338 = sshll.u32 %s325, 4
      %339 = dma.done %s337, %s338
      %s340 = sadd.s32 4, %s323
      %s341 = scalar_lea.sflag [#allocation2], %s340
      %s342 = sshll.u32 %s325, 4
      %343 = dma.done %s341, %s342
      %s344 = sadd.s32 5, %s323
      %s345 = scalar_lea.sflag [#allocation2], %s344
      %s346 = sshll.u32 %s325, 4
      %347 = dma.done %s345, %s346
      %s348 = sadd.s32 6, %s323
      %s349 = scalar_lea.sflag [#allocation2], %s348
      %s350 = sshll.u32 %s325, 4
      %351 = dma.done %s349, %s350
      %s352 = sadd.s32 7, %s323
      %s353 = scalar_lea.sflag [#allocation2], %s352
      %s354 = sshll.u32 %s325, 4
      %355 = dma.done %s353, %s354
      %s356 = sadd.s32 8, %s323
      %s357 = scalar_lea.sflag [#allocation2], %s356
      %s358 = sshll.u32 %s325, 4
      %359 = dma.done %s357, %s358
      %s360 = sadd.s32 9, %s323
      %s361 = scalar_lea.sflag [#allocation2], %s360
      %s362 = sshll.u32 %s325, 4
      %363 = dma.done %s361, %s362
      %s364 = sadd.s32 10, %s323
      %s365 = scalar_lea.sflag [#allocation2], %s364
      %s366 = sshll.u32 %s325, 4
      %367 = dma.done %s365, %s366
      %s368 = sadd.s32 11, %s323
      %s369 = scalar_lea.sflag [#allocation2], %s368
      %s370 = sshll.u32 %s325, 4
      %371 = dma.done %s369, %s370
      %s372 = sadd.s32 12, %s323
      %s373 = scalar_lea.sflag [#allocation2], %s372
      %s374 = sshll.u32 %s325, 4
      %375 = dma.done %s373, %s374
      %s376 = sadd.s32 13, %s323
      %s377 = scalar_lea.sflag [#allocation2], %s376
      %s378 = sshll.u32 %s325, 4
      %379 = dma.done %s377, %s378
      %s380 = sadd.s32 14, %s323
      %s381 = scalar_lea.sflag [#allocation2], %s380
      %s382 = sshll.u32 %s325, 4
      %383 = dma.done %s381, %s382
      %s384 = sadd.s32 15, %s323
      %s385 = scalar_lea.sflag [#allocation2], %s384
      %s386 = sshll.u32 %s325, 4
      %387 = dma.done %s385, %s386
    $region12: #{tpu_custom_call.1} parent=5 // pred_fallthru
      _
    %p388 = scmp.eq.s32.totalorder %s12, 1
    // Predicated region
    $region13: #{tpu_custom_call.1} parent=5 // pred_check
      %p389 = pneg %p388
    $region14: #{tpu_custom_call.1} parent=5 // pred_check_branch
      %391 = sbr.rel (%p389) target = $region16
    $region15: #{tpu_custom_call.1} parent=5 // pred_region
      %s392 = smul.u32 4, 1
      %s393 = sshll.u32 %s392, 4
      %394 = dma.done %s41, %s393
      %s395 = sshll.u32 %s392, 4
      %396 = dma.done %s59, %s395
      %s397 = sshll.u32 %s392, 4
      %398 = dma.done %s77, %s397
      %s399 = sshll.u32 %s392, 4
      %400 = dma.done %s95, %s399
      %s401 = sshll.u32 %s392, 4
      %402 = dma.done %s113, %s401
      %s403 = sshll.u32 %s392, 4
      %404 = dma.done %s131, %s403
      %s405 = sshll.u32 %s392, 4
      %406 = dma.done %s149, %s405
      %s407 = sshll.u32 %s392, 4
      %408 = dma.done %s167, %s407
      %s409 = sshll.u32 %s392, 4
      %410 = dma.done %s185, %s409
      %s411 = sshll.u32 %s392, 4
      %412 = dma.done %s203, %s411
      %s413 = sshll.u32 %s392, 4
      %414 = dma.done %s221, %s413
      %s415 = sshll.u32 %s392, 4
      %416 = dma.done %s239, %s415
      %s417 = sshll.u32 %s392, 4
      %418 = dma.done %s257, %s417
      %s419 = sshll.u32 %s392, 4
      %420 = dma.done %s275, %s419
      %s421 = sshll.u32 %s392, 4
      %422 = dma.done %s293, %s421
      %s423 = sshll.u32 %s392, 4
      %424 = dma.done %s311, %s423
    $region16: #{tpu_custom_call.1} parent=5 // pred_fallthru
      _
  $region6: #{tpu_custom_call.1} parent=0 // loop_footer
    %s16 = sadd.s32 1, %s12
  $region7: #{tpu_custom_call.1} parent=0 // loop_footer_branch
    %11 = sbr.rel target = $region3
  $region8: #{tpu_custom_call.1} parent=0 // loop_exit
    _
  %425 = vsyncmov [#allocation2]
  %s426 = vpop.sfrf %425
  %p427 = scmp.eq.s32.totalorder %s426, 0
  %p428 = pneg %p427
  %430 = shalt.err (%p428)
  %s431 = scalar_lea.sflag [#allocation2], 1
  %432 = vsyncmov %s431
  %s433 = vpop.sfrf %432
  %p434 = scmp.eq.s32.totalorder %s433, 0
  %p435 = pneg %p434
  %437 = shalt.err (%p435)
  %s438 = scalar_lea.sflag [#allocation2], 2
  %439 = vsyncmov %s438
  %s440 = vpop.sfrf %439
  %p441 = scmp.eq.s32.totalorder %s440, 0
  %p442 = pneg %p441
  %444 = shalt.err (%p442)
  %s445 = scalar_lea.sflag [#allocation2], 3
  %446 = vsyncmov %s445
  %s447 = vpop.sfrf %446
  %p448 = scmp.eq.s32.totalorder %s447, 0
  %p449 = pneg %p448
  %451 = shalt.err (%p449)
  %s452 = scalar_lea.sflag [#allocation2], 4
  %453 = vsyncmov %s452
  %s454 = vpop.sfrf %453
  %p455 = scmp.eq.s32.totalorder %s454, 0
  %p456 = pneg %p455
  %458 = shalt.err (%p456)
  %s459 = scalar_lea.sflag [#allocation2], 5
  %460 = vsyncmov %s459
  %s461 = vpop.sfrf %460
  %p462 = scmp.eq.s32.totalorder %s461, 0
  %p463 = pneg %p462
  %465 = shalt.err (%p463)
  %s466 = scalar_lea.sflag [#allocation2], 6
  %467 = vsyncmov %s466
  %s468 = vpop.sfrf %467
  %p469 = scmp.eq.s32.totalorder %s468, 0
  %p470 = pneg %p469
  %472 = shalt.err (%p470)
  %s473 = scalar_lea.sflag [#allocation2], 7
  %474 = vsyncmov %s473
  %s475 = vpop.sfrf %474
  %p476 = scmp.eq.s32.totalorder %s475, 0
  %p477 = pneg %p476
  %479 = shalt.err (%p477)
  %s480 = scalar_lea.sflag [#allocation2], 8
  %481 = vsyncmov %s480
  %s482 = vpop.sfrf %481
  %p483 = scmp.eq.s32.totalorder %s482, 0
  %p484 = pneg %p483
  %486 = shalt.err (%p484)
  %s487 = scalar_lea.sflag [#allocation2], 9
  %488 = vsyncmov %s487
  %s489 = vpop.sfrf %488
  %p490 = scmp.eq.s32.totalorder %s489, 0
  %p491 = pneg %p490
  %493 = shalt.err (%p491)
  %s494 = scalar_lea.sflag [#allocation2], 10
  %495 = vsyncmov %s494
  %s496 = vpop.sfrf %495
  %p497 = scmp.eq.s32.totalorder %s496, 0
  %p498 = pneg %p497
  %500 = shalt.err (%p498)
  %s501 = scalar_lea.sflag [#allocation2], 11
  %502 = vsyncmov %s501
  %s503 = vpop.sfrf %502
  %p504 = scmp.eq.s32.totalorder %s503, 0
  %p505 = pneg %p504
  %507 = shalt.err (%p505)
  %s508 = scalar_lea.sflag [#allocation2], 12
  %509 = vsyncmov %s508
  %s510 = vpop.sfrf %509
  %p511 = scmp.eq.s32.totalorder %s510, 0
  %p512 = pneg %p511
  %514 = shalt.err (%p512)
  %s515 = scalar_lea.sflag [#allocation2], 13
  %516 = vsyncmov %s515
  %s517 = vpop.sfrf %516
  %p518 = scmp.eq.s32.totalorder %s517, 0
  %p519 = pneg %p518
  %521 = shalt.err (%p519)
  %s522 = scalar_lea.sflag [#allocation2], 14
  %523 = vsyncmov %s522
  %s524 = vpop.sfrf %523
  %p525 = scmp.eq.s32.totalorder %s524, 0
  %p526 = pneg %p525
  %528 = shalt.err (%p526)
  %s529 = scalar_lea.sflag [#allocation2], 15
  %530 = vsyncmov %s529
  %s531 = vpop.sfrf %530
  %p532 = scmp.eq.s32.totalorder %s531, 0
  %p533 = pneg %p532
  %535 = shalt.err (%p533)
  %s536 = scalar_lea.sflag [#allocation2], 16
  %537 = vsyncmov %s536
  %s538 = vpop.sfrf %537
  %p539 = scmp.eq.s32.totalorder %s538, 0
  %p540 = pneg %p539
  %542 = shalt.err (%p540)
  %s543 = scalar_lea.sflag [#allocation2], 17
  %544 = vsyncmov %s543
  %s545 = vpop.sfrf %544
  %p546 = scmp.eq.s32.totalorder %s545, 0
  %p547 = pneg %p546
  %549 = shalt.err (%p547)
  %s550 = scalar_lea.sflag [#allocation2], 18
  %551 = vsyncmov %s550
  %s552 = vpop.sfrf %551
  %p553 = scmp.eq.s32.totalorder %s552, 0
  %p554 = pneg %p553
  %556 = shalt.err (%p554)
  %s557 = scalar_lea.sflag [#allocation2], 19
  %558 = vsyncmov %s557
  %s559 = vpop.sfrf %558
  %p560 = scmp.eq.s32.totalorder %s559, 0
  %p561 = pneg %p560
  %563 = shalt.err (%p561)
  %s564 = scalar_lea.sflag [#allocation2], 20
  %565 = vsyncmov %s564
  %s566 = vpop.sfrf %565
  %p567 = scmp.eq.s32.totalorder %s566, 0
  %p568 = pneg %p567
  %570 = shalt.err (%p568)
  %s571 = scalar_lea.sflag [#allocation2], 21
  %572 = vsyncmov %s571
  %s573 = vpop.sfrf %572
  %p574 = scmp.eq.s32.totalorder %s573, 0
  %p575 = pneg %p574
  %577 = shalt.err (%p575)
  %s578 = scalar_lea.sflag [#allocation2], 22
  %579 = vsyncmov %s578
  %s580 = vpop.sfrf %579
  %p581 = scmp.eq.s32.totalorder %s580, 0
  %p582 = pneg %p581
  %584 = shalt.err (%p582)
  %s585 = scalar_lea.sflag [#allocation2], 23
  %586 = vsyncmov %s585
  %s587 = vpop.sfrf %586
  %p588 = scmp.eq.s32.totalorder %s587, 0
  %p589 = pneg %p588
  %591 = shalt.err (%p589)
  %s592 = scalar_lea.sflag [#allocation2], 24
  %593 = vsyncmov %s592
  %s594 = vpop.sfrf %593
  %p595 = scmp.eq.s32.totalorder %s594, 0
  %p596 = pneg %p595
  %598 = shalt.err (%p596)
  %s599 = scalar_lea.sflag [#allocation2], 25
  %600 = vsyncmov %s599
  %s601 = vpop.sfrf %600
  %p602 = scmp.eq.s32.totalorder %s601, 0
  %p603 = pneg %p602
  %605 = shalt.err (%p603)
  %s606 = scalar_lea.sflag [#allocation2], 26
  %607 = vsyncmov %s606
  %s608 = vpop.sfrf %607
  %p609 = scmp.eq.s32.totalorder %s608, 0
  %p610 = pneg %p609
  %612 = shalt.err (%p610)
  %s613 = scalar_lea.sflag [#allocation2], 27
  %614 = vsyncmov %s613
  %s615 = vpop.sfrf %614
  %p616 = scmp.eq.s32.totalorder %s615, 0
  %p617 = pneg %p616
  %619 = shalt.err (%p617)
  %s620 = scalar_lea.sflag [#allocation2], 28
  %621 = vsyncmov %s620
  %s622 = vpop.sfrf %621
  %p623 = scmp.eq.s32.totalorder %s622, 0
  %p624 = pneg %p623
  %626 = shalt.err (%p624)
  %s627 = scalar_lea.sflag [#allocation2], 29
  %628 = vsyncmov %s627
  %s629 = vpop.sfrf %628
  %p630 = scmp.eq.s32.totalorder %s629, 0
  %p631 = pneg %p630
  %633 = shalt.err (%p631)
  %s634 = scalar_lea.sflag [#allocation2], 30
  %635 = vsyncmov %s634
  %s636 = vpop.sfrf %635
  %p637 = scmp.eq.s32.totalorder %s636, 0
  %p638 = pneg %p637
  %640 = shalt.err (%p638)
  %s641 = scalar_lea.sflag [#allocation2], 31
  %642 = vsyncmov %s641
  %s643 = vpop.sfrf %642
  %p644 = scmp.eq.s32.totalorder %s643, 0
  %p645 = pneg %p644
  %647 = shalt.err (%p645)

</llo_original>
